<compile_context>
chip_gen: v7x
topology: tpu7x:2x2x1
jax: 0.10.0
libtpu: 0.0.40
codegen_flags: <defaults>
</compile_context>

<pallas_src>
import math

import jax
import jax.numpy as jnp
from jax.experimental import pallas as pl
from jax.experimental.pallas import tpu as pltpu

# --- module configuration (consistent with CCconv(8, 16, 3, 1)) --------------
IN_C = 8          # in_Channels (>= 8 so B stays 8, the interesting path)
OUT_C = 16        # out_channel
KS = 3            # ks
PAD = 1           # pad  (2*PAD == KS-1, i.e. "same" conv)
BGROUPS = 8 if IN_C >= 8 else 1
GD = OUT_C // BGROUPS          # group_dim


# --------------------------- Pallas kernel -----------------------------------
def _make_kernel(wp, s_out):
    """Kernel closure over the padded width (wp) and valid row count (s_out)."""
    n_taps = KS * KS

    def kernel(x_ref, w_ref, b_ref, o_ref):
        # x_ref: (S, IN_C)        bf16 -- one padded image, channels-last,
        #                                 spatial flattened (S = Hp*Wp).
        # w_ref: (9, OUT_C, IN_C) f32  -- folded per-tap weights (tiny).
        # b_ref: (OUT_C, 1)       f32  -- folded bias.
        # o_ref: (OUT_C, s_out)   f32  -- channels-major output: lane dim is the
        #                                 spatial index -> lane-dense stores.
        x = x_ref[...].astype(jnp.float32)                      # one cheap upcast
        acc = jnp.broadcast_to(b_ref[...], (o_ref.shape[0], s_out))
        for t in range(n_taps):
            kh, kw = divmod(t, KS)
            d = kh * wp + kw
            # Tap (kh, kw) of the 3x3 window == the same flattened image shifted
            # by kh*Wp + kw rows: a plain static sublane slice, no im2col.
            tap = x[d:d + s_out, :]                              # (s_out, IN_C)
            # acc[o, p] += sum_c w[t, o, c] * tap[p, c]  == W_t @ tap^T on the
            # MXU (q@k^T contraction), keeping the result channels-major
            # without any in-kernel transpose.
            acc = acc + jax.lax.dot_general(
                w_ref[t], tap,
                dimension_numbers=(((1,), (1,)), ((), ())),
                preferred_element_type=jnp.float32)
        o_ref[...] = acc

    return kernel


# ---------------------- weight folding (wrapper, f32) ------------------------
def fold_ccconv_params(params):
    """Fold conv1 + pair_conv/pw1 + all_conv/pw2 + the /3 average into ONE
    effective ks x ks conv.  Exact: the PyTorch forward has no nonlinearity."""
    (w1, b1, wpair, bpair, wpw1, bpw1, wall, ball, wpw2, bpw2) = params

    if BGROUPS == 1:
        A = jnp.eye(OUT_C, dtype=jnp.float32)
        c = jnp.zeros((OUT_C,), jnp.float32)
    else:
        # pair_conv over adjacent channel groups as one block-structured matrix.
        wpf = jnp.transpose(wpair[:, :GD, 0, 0])       # (GD, GD)  front half
        wpb = jnp.transpose(wpair[:, GD:, 0, 0])       # (GD, GD)  back half
        M = jnp.zeros((OUT_C, (BGROUPS - 1) * GD), jnp.float32)
        for g in range(BGROUPS - 1):
            M = M.at[g * GD:(g + 1) * GD, g * GD:(g + 1) * GD].set(wpf)
            M = M.at[(g + 1) * GD:(g + 2) * GD, g * GD:(g + 1) * GD].set(wpb)
        bpair_t = jnp.tile(bpair, BGROUPS - 1)         # ((B-1)*GD,)
        wpw1_m = jnp.transpose(wpw1[:, :, 0, 0])       # ((B-1)*GD, OUT_C)
        wall_m = jnp.transpose(wall[:, :, 0, 0])       # (OUT_C, GD)
        wpw2_m = jnp.transpose(wpw2[:, :, 0, 0])       # (GD, OUT_C)
        # (rel1 + rel2 + y) / 3 == y @ A + c
        A = (jnp.eye(OUT_C, dtype=jnp.float32) + M @ wpw1_m + wall_m @ wpw2_m) / 3.0
        c = (bpair_t @ wpw1_m + bpw1 + ball @ wpw2_m + bpw2) / 3.0

    # Fold A into the conv weight: W_fold[x,i,kh,kw] = sum_o w1[o,i,kh,kw] A[o,x]
    w_fold = jnp.einsum('oihw,ox->xihw', w1.astype(jnp.float32), A)
    b_eff = b1 @ A + c                                           # (OUT_C,)
    # Per-tap (OUT_C, IN_C) matrices, tap index t = kh*KS + kw.
    w_taps = jnp.transpose(w_fold, (2, 3, 0, 1)).reshape(KS * KS, OUT_C, IN_C)
    return (w_taps.astype(jnp.float32),
            b_eff.reshape(OUT_C, 1).astype(jnp.float32))


# ------------------------------ wrapper ---------------------------------------
def ccconv_forward(x_nchw, params):
    """Fused CCconv forward.  Returns NCHW float32, same math as the module."""
    w_taps, b_eff = fold_ccconv_params(params)
    N, C, H, W = x_nchw.shape
    assert C == IN_C
    hp, wp = H + 2 * PAD, W + 2 * PAD
    s = hp * wp
    s_out = s - (KS - 1) * (wp + 1)     # rows whose full 3x3 window is in-bounds

    # NCHW -> spatially padded, channels-last, spatially flattened, bf16 stream.
    xp = jnp.pad(x_nchw, ((0, 0), (0, 0), (PAD, PAD), (PAD, PAD)))
    x_flat = jnp.transpose(xp, (0, 2, 3, 1)).reshape(N, s, C).astype(jnp.bfloat16)

    out = pl.pallas_call(
        _make_kernel(wp, s_out),
        out_shape=jax.ShapeDtypeStruct((N, OUT_C, s_out), jnp.float32),
        grid_spec=pltpu.PrefetchScalarGridSpec(
            num_scalar_prefetch=0,
            grid=(N,),                                 # one padded image / step
            in_specs=[
                pl.BlockSpec((None, s, C), lambda n: (n, 0, 0)),
                pl.BlockSpec((KS * KS, OUT_C, IN_C), lambda n: (0, 0, 0)),
                pl.BlockSpec((OUT_C, 1), lambda n: (0, 0)),
            ],
            out_specs=pl.BlockSpec((None, OUT_C, s_out), lambda n: (n, 0, 0)),
        ),
        compiler_params=pltpu.CompilerParams(
            dimension_semantics=("parallel",)),        # v7x: split images over TCs
    )(x_flat, w_taps, b_eff)

    # out[n, :, ph*wp + pw] is the result at output pixel (ph, pw); positions
    # whose 3x3 window straddles a padded row boundary are junk -> sliced off.
    out = jnp.pad(out, ((0, 0), (0, 0), (0, H * wp - s_out)))
    return out.reshape(N, OUT_C, H, wp)[:, :, :, :W]   # already NCHW, no transpose


# --------------------------- pure-JAX reference -------------------------------
def ccconv_reference(x_nchw, params):
    (w1, b1, wpair, bpair, wpw1, bpw1, wall, ball, wpw2, bpw2) = params
    dn = ('NCHW', 'OIHW', 'NCHW')

    def conv(x, w, b, pad):
        y = jax.lax.conv_general_dilated(x, w, (1, 1), [(pad, pad), (pad, pad)],
                                         dimension_numbers=dn)
        return y + b.reshape(1, -1, 1, 1)

    y = conv(x_nchw, w1, b1, PAD)
    if BGROUPS == 1:
        return y
    N, C, H, W = y.shape
    yg = y.reshape(N, BGROUPS, GD, H, W)
    front, back = yg[:, :-1], yg[:, 1:]
    pairs = jnp.concatenate([front, back], axis=2).reshape(-1, 2 * GD, H, W)
    r1 = conv(pairs, wpair, bpair, 0).reshape(N, (BGROUPS - 1) * GD, H, W)
    r1 = conv(r1, wpw1, bpw1, 0)
    r2 = conv(conv(y, wall, ball, 0), wpw2, bpw2, 0)
    return (r1 + r2 + y) / 3.0


# ---------------------------------- main ---------------------------------------
if __name__ == "__main__":
    key = jax.random.PRNGKey(0)
    keys = jax.random.split(key, 6)

    def kaiming(k, shape):  # kaiming_normal_, mode='fan_out', relu
        fan_out = shape[0] * shape[2] * shape[3]
        std = math.sqrt(2.0 / fan_out)
        return (std * jax.random.normal(k, shape)).astype(jnp.float32)

    w1 = kaiming(keys[0], (OUT_C, IN_C, KS, KS));               b1 = jnp.zeros((OUT_C,), jnp.float32)
    wpair = kaiming(keys[1], (GD, 2 * GD, 1, 1));               bpair = jnp.zeros((GD,), jnp.float32)
    wpw1 = kaiming(keys[2], (OUT_C, (BGROUPS - 1) * GD, 1, 1)); bpw1 = jnp.zeros((OUT_C,), jnp.float32)
    wall = kaiming(keys[3], (GD, OUT_C, 1, 1));                 ball = jnp.zeros((GD,), jnp.float32)
    wpw2 = kaiming(keys[4], (OUT_C, GD, 1, 1));                 bpw2 = jnp.zeros((OUT_C,), jnp.float32)
    params = (w1, b1, wpair, bpair, wpw1, bpw1, wall, ball, wpw2, bpw2)

    x = jax.random.normal(keys[5], (2, IN_C, 16, 16), dtype=jnp.float32)

    out = jax.block_until_ready(ccconv_forward(x, params))
    ref = jax.block_until_ready(ccconv_reference(x, params))

    assert out.shape == (2, OUT_C, 16, 16), out.shape
    max_err = float(jnp.max(jnp.abs(out - ref)))
    # Activations are streamed in bf16 (f32 accumulation), so use a bf16-aware
    # tolerance against the pure-f32 reference.
    assert jnp.allclose(out, ref, atol=2e-2, rtol=2e-2), f"max_err={max_err}"
    print("KERNEL_OK")
</pallas_src>

<mosaic_0001>
module attributes {stable_mosaic.version = 11 : i64} {
  func.func @kernel(%arg0: i32, %arg1: memref<1x324x8xbf16, #tpu.memory_space<vmem>>, %arg2: memref<9x16x8xf32, #tpu.memory_space<vmem>>, %arg3: memref<16x1xf32, #tpu.memory_space<vmem>>, %arg4: memref<1x16x286xf32, #tpu.memory_space<vmem>>) attributes {dimension_semantics = [#tpu.dimension_semantics<parallel>], iteration_bounds = array<i64: 2>, scalar_prefetch = 0 : i64, scratch_operands = 0 : i64, tpu.core_type = #tpu.core_type<tc>, window_params = [{transform_indices = @transform_0, window_bounds = array<i64: 1, 324, 8>}, {pipeline_mode = #tpu.pipeline_mode<synchronous>, transform_indices = @transform_1, window_bounds = array<i64: 9, 16, 8>}, {pipeline_mode = #tpu.pipeline_mode<synchronous>, transform_indices = @transform_2, window_bounds = array<i64: 16, 1>}, {transform_indices = @transform_3, window_bounds = array<i64: 1, 16, 286>}]} {
    %c0 = arith.constant 0 : index
    %c0_0 = arith.constant 0 : index
    %c0_1 = arith.constant 0 : index
    %0 = vector.load %arg1[%c0, %c0_0, %c0_1] : memref<1x324x8xbf16, #tpu.memory_space<vmem>>, vector<1x324x8xbf16>
    %1 = vector.shape_cast %0 : vector<1x324x8xbf16> to vector<324x8xbf16>
    %2 = arith.extf %1 : vector<324x8xbf16> to vector<324x8xf32>
    %c0_2 = arith.constant 0 : index
    %c0_3 = arith.constant 0 : index
    %3 = vector.load %arg3[%c0_2, %c0_3] : memref<16x1xf32, #tpu.memory_space<vmem>>, vector<16x1xf32>
    %4 = vector.shape_cast %3 : vector<16x1xf32> to vector<16x1xf32>
    %5 = vector.broadcast %4 : vector<16x1xf32> to vector<16x286xf32>
    %6 = vector.extract_strided_slice %2 {offsets = [0, 0], sizes = [286, 8], strides = [1, 1]} : vector<324x8xf32> to vector<286x8xf32>
    %c0_4 = arith.constant 0 : index
    %c0_5 = arith.constant 0 : index
    %c0_6 = arith.constant 0 : index
    %7 = vector.load %arg2[%c0_4, %c0_5, %c0_6] : memref<9x16x8xf32, #tpu.memory_space<vmem>>, vector<1x16x8xf32>
    %8 = vector.shape_cast %7 : vector<1x16x8xf32> to vector<16x8xf32>
    %cst = arith.constant dense<0.000000e+00> : vector<16x286xf32>
    %9 = tpu.matmul %8, %6, %cst {dimension_numbers = #tpu.dot_dimension_numbers<[1], [1], [0], [0], [0, 0, 1, 0], [], []>} : vector<16x8xf32>, vector<286x8xf32>, vector<16x286xf32> -> vector<16x286xf32>
    %10 = arith.addf %5, %9 : vector<16x286xf32>
    %11 = vector.extract_strided_slice %2 {offsets = [1, 0], sizes = [286, 8], strides = [1, 1]} : vector<324x8xf32> to vector<286x8xf32>
    %c1 = arith.constant 1 : index
    %c0_7 = arith.constant 0 : index
    %c0_8 = arith.constant 0 : index
    %12 = vector.load %arg2[%c1, %c0_7, %c0_8] : memref<9x16x8xf32, #tpu.memory_space<vmem>>, vector<1x16x8xf32>
    %13 = vector.shape_cast %12 : vector<1x16x8xf32> to vector<16x8xf32>
    %cst_9 = arith.constant dense<0.000000e+00> : vector<16x286xf32>
    %14 = tpu.matmul %13, %11, %cst_9 {dimension_numbers = #tpu.dot_dimension_numbers<[1], [1], [0], [0], [0, 0, 1, 0], [], []>} : vector<16x8xf32>, vector<286x8xf32>, vector<16x286xf32> -> vector<16x286xf32>
    %15 = arith.addf %10, %14 : vector<16x286xf32>
    %16 = vector.extract_strided_slice %2 {offsets = [2, 0], sizes = [286, 8], strides = [1, 1]} : vector<324x8xf32> to vector<286x8xf32>
    %c2 = arith.constant 2 : index
    %c0_10 = arith.constant 0 : index
    %c0_11 = arith.constant 0 : index
    %17 = vector.load %arg2[%c2, %c0_10, %c0_11] : memref<9x16x8xf32, #tpu.memory_space<vmem>>, vector<1x16x8xf32>
    %18 = vector.shape_cast %17 : vector<1x16x8xf32> to vector<16x8xf32>
    %cst_12 = arith.constant dense<0.000000e+00> : vector<16x286xf32>
    %19 = tpu.matmul %18, %16, %cst_12 {dimension_numbers = #tpu.dot_dimension_numbers<[1], [1], [0], [0], [0, 0, 1, 0], [], []>} : vector<16x8xf32>, vector<286x8xf32>, vector<16x286xf32> -> vector<16x286xf32>
    %20 = arith.addf %15, %19 : vector<16x286xf32>
    %21 = vector.extract_strided_slice %2 {offsets = [18, 0], sizes = [286, 8], strides = [1, 1]} : vector<324x8xf32> to vector<286x8xf32>
    %c3 = arith.constant 3 : index
    %c0_13 = arith.constant 0 : index
    %c0_14 = arith.constant 0 : index
    %22 = vector.load %arg2[%c3, %c0_13, %c0_14] : memref<9x16x8xf32, #tpu.memory_space<vmem>>, vector<1x16x8xf32>
    %23 = vector.shape_cast %22 : vector<1x16x8xf32> to vector<16x8xf32>
    %cst_15 = arith.constant dense<0.000000e+00> : vector<16x286xf32>
    %24 = tpu.matmul %23, %21, %cst_15 {dimension_numbers = #tpu.dot_dimension_numbers<[1], [1], [0], [0], [0, 0, 1, 0], [], []>} : vector<16x8xf32>, vector<286x8xf32>, vector<16x286xf32> -> vector<16x286xf32>
    %25 = arith.addf %20, %24 : vector<16x286xf32>
    %26 = vector.extract_strided_slice %2 {offsets = [19, 0], sizes = [286, 8], strides = [1, 1]} : vector<324x8xf32> to vector<286x8xf32>
    %c4 = arith.constant 4 : index
    %c0_16 = arith.constant 0 : index
    %c0_17 = arith.constant 0 : index
    %27 = vector.load %arg2[%c4, %c0_16, %c0_17] : memref<9x16x8xf32, #tpu.memory_space<vmem>>, vector<1x16x8xf32>
    %28 = vector.shape_cast %27 : vector<1x16x8xf32> to vector<16x8xf32>
    %cst_18 = arith.constant dense<0.000000e+00> : vector<16x286xf32>
    %29 = tpu.matmul %28, %26, %cst_18 {dimension_numbers = #tpu.dot_dimension_numbers<[1], [1], [0], [0], [0, 0, 1, 0], [], []>} : vector<16x8xf32>, vector<286x8xf32>, vector<16x286xf32> -> vector<16x286xf32>
    %30 = arith.addf %25, %29 : vector<16x286xf32>
    %31 = vector.extract_strided_slice %2 {offsets = [20, 0], sizes = [286, 8], strides = [1, 1]} : vector<324x8xf32> to vector<286x8xf32>
    %c5 = arith.constant 5 : index
    %c0_19 = arith.constant 0 : index
    %c0_20 = arith.constant 0 : index
    %32 = vector.load %arg2[%c5, %c0_19, %c0_20] : memref<9x16x8xf32, #tpu.memory_space<vmem>>, vector<1x16x8xf32>
    %33 = vector.shape_cast %32 : vector<1x16x8xf32> to vector<16x8xf32>
    %cst_21 = arith.constant dense<0.000000e+00> : vector<16x286xf32>
    %34 = tpu.matmul %33, %31, %cst_21 {dimension_numbers = #tpu.dot_dimension_numbers<[1], [1], [0], [0], [0, 0, 1, 0], [], []>} : vector<16x8xf32>, vector<286x8xf32>, vector<16x286xf32> -> vector<16x286xf32>
    %35 = arith.addf %30, %34 : vector<16x286xf32>
    %36 = vector.extract_strided_slice %2 {offsets = [36, 0], sizes = [286, 8], strides = [1, 1]} : vector<324x8xf32> to vector<286x8xf32>
    %c6 = arith.constant 6 : index
    %c0_22 = arith.constant 0 : index
    %c0_23 = arith.constant 0 : index
    %37 = vector.load %arg2[%c6, %c0_22, %c0_23] : memref<9x16x8xf32, #tpu.memory_space<vmem>>, vector<1x16x8xf32>
    %38 = vector.shape_cast %37 : vector<1x16x8xf32> to vector<16x8xf32>
    %cst_24 = arith.constant dense<0.000000e+00> : vector<16x286xf32>
    %39 = tpu.matmul %38, %36, %cst_24 {dimension_numbers = #tpu.dot_dimension_numbers<[1], [1], [0], [0], [0, 0, 1, 0], [], []>} : vector<16x8xf32>, vector<286x8xf32>, vector<16x286xf32> -> vector<16x286xf32>
    %40 = arith.addf %35, %39 : vector<16x286xf32>
    %41 = vector.extract_strided_slice %2 {offsets = [37, 0], sizes = [286, 8], strides = [1, 1]} : vector<324x8xf32> to vector<286x8xf32>
    %c7 = arith.constant 7 : index
    %c0_25 = arith.constant 0 : index
    %c0_26 = arith.constant 0 : index
    %42 = vector.load %arg2[%c7, %c0_25, %c0_26] : memref<9x16x8xf32, #tpu.memory_space<vmem>>, vector<1x16x8xf32>
    %43 = vector.shape_cast %42 : vector<1x16x8xf32> to vector<16x8xf32>
    %cst_27 = arith.constant dense<0.000000e+00> : vector<16x286xf32>
    %44 = tpu.matmul %43, %41, %cst_27 {dimension_numbers = #tpu.dot_dimension_numbers<[1], [1], [0], [0], [0, 0, 1, 0], [], []>} : vector<16x8xf32>, vector<286x8xf32>, vector<16x286xf32> -> vector<16x286xf32>
    %45 = arith.addf %40, %44 : vector<16x286xf32>
    %46 = vector.extract_strided_slice %2 {offsets = [38, 0], sizes = [286, 8], strides = [1, 1]} : vector<324x8xf32> to vector<286x8xf32>
    %c8 = arith.constant 8 : index
    %c0_28 = arith.constant 0 : index
    %c0_29 = arith.constant 0 : index
    %47 = vector.load %arg2[%c8, %c0_28, %c0_29] : memref<9x16x8xf32, #tpu.memory_space<vmem>>, vector<1x16x8xf32>
    %48 = vector.shape_cast %47 : vector<1x16x8xf32> to vector<16x8xf32>
    %cst_30 = arith.constant dense<0.000000e+00> : vector<16x286xf32>
    %49 = tpu.matmul %48, %46, %cst_30 {dimension_numbers = #tpu.dot_dimension_numbers<[1], [1], [0], [0], [0, 0, 1, 0], [], []>} : vector<16x8xf32>, vector<286x8xf32>, vector<16x286xf32> -> vector<16x286xf32>
    %50 = arith.addf %45, %49 : vector<16x286xf32>
    %c0_31 = arith.constant 0 : index
    %c0_32 = arith.constant 0 : index
    %c0_33 = arith.constant 0 : index
    %51 = vector.load %arg4[%c0_31, %c0_32, %c0_33] : memref<1x16x286xf32, #tpu.memory_space<vmem>>, vector<1x16x286xf32>
    %52 = vector.shape_cast %51 : vector<1x16x286xf32> to vector<16x286xf32>
    %53 = vector.shape_cast %50 : vector<16x286xf32> to vector<1x16x286xf32>
    tpu.vector_store %arg4[%c0_31, %c0_32, %c0_33], %53 {strides = array<i32>} : memref<1x16x286xf32, #tpu.memory_space<vmem>>, vector<1x16x286xf32>,
    return
  }
  func.func @transform_0(%arg0: i32) -> (i32, i32, i32) {
    %c0_i32 = arith.constant 0 : i32
    %c0_i32_0 = arith.constant 0 : i32
    %c0_i32_1 = arith.constant 0 : i32
    return %arg0, %c0_i32, %c0_i32_0 : i32, i32, i32
  }
  func.func @transform_1(%arg0: i32) -> (i32, i32, i32) {
    %c0_i32 = arith.constant 0 : i32
    %c0_i32_0 = arith.constant 0 : i32
    %c0_i32_1 = arith.constant 0 : i32
    %c0_i32_2 = arith.constant 0 : i32
    return %c0_i32, %c0_i32_0, %c0_i32_1 : i32, i32, i32
  }
  func.func @transform_2(%arg0: i32) -> (i32, i32) {
    %c0_i32 = arith.constant 0 : i32
    %c0_i32_0 = arith.constant 0 : i32
    %c0_i32_1 = arith.constant 0 : i32
    return %c0_i32, %c0_i32_0 : i32, i32
  }
  func.func @transform_3(%arg0: i32) -> (i32, i32, i32) {
    %c0_i32 = arith.constant 0 : i32
    %c0_i32_0 = arith.constant 0 : i32
    %c0_i32_1 = arith.constant 0 : i32
    return %arg0, %c0_i32, %c0_i32_0 : i32, i32, i32
  }
}

</mosaic_0001>

<llo_original>
// kernel: tpu_custom_call.1
$region0: #{tpu_custom_call.1}
  #allocation0 [shape = 'u32[]', space=smem, size = 0x4, offset = 0x4, fixed_abs, tag = 'smem constant byte address 0x4 - core index']
  #allocation1 [shape = 'u32[144,128]{1,0:T(1,128)}', space=vmem, size = 0x12000, scoped, tag = 'internal scratch']
  %s0 = inlined_call_operand.vmem [shape: bf16[2,324,8], index: 0, kind: input, shape index: {}]
  %s1 = inlined_call_operand.vmem [shape: f32[9,16,8], index: 1, kind: input, shape index: {}]
  %s2 = inlined_call_operand.vmem [shape: f32[16,1], index: 2, kind: input, shape index: {}]
  %s3 = inlined_call_operand.hbm [shape: f32[2,16,286], index: 3, kind: output, shape index: {}]
  %s4 = sld [smem:[#allocation0]]
  $region45: #{tpu_custom_call.1} parent=0
    _
  %s6 = ssub.s32 1, %s4
  %s7 = scalar_select 0, %s6, %s4
  $region1: #{tpu_custom_call.1} parent=0
    #allocation2 [shape = 'u8[49152]{0}', space=vmem, size = 0xc000, scoped, tag = 'output window, operand 0']
    #allocation3 [shape = 's32[2]{0}', space=sflag, size = 0x8, scoped, tag = 'scoped memory for tpu_custom_call.1']
    %8 = vsyncpa [#allocation3], 0
    %s9 = scalar_lea.sflag [#allocation3], 1
    %10 = vsyncpa %s9, 0
    loop: start=0, step=1, limit=4
    $region2: #{tpu_custom_call.1} parent=1 // loop_pre_header
      _
    $region3: #{tpu_custom_call.1} parent=1 // loop_header
      %s12 = sphi 0, %s16
      %p13 = scmp.ge.s32.totalorder %s12, 4
      %s22 = sphi 0, %s24
      %s25 = sphi 0, %s22
      %s26 = sphi 0, %s25
      %s42 = sphi 0, %s26
      %s46 = sphi 0, %s46
      %s48 = sphi 0, %s46
      %s49 = sphi 0, %s48
      %s63 = sphi 0, %s49
      %s67 = sphi 0, %s67
      %s69 = sphi 0, %s67
      %s70 = sphi 0, %s69
      %s84 = sphi 0, %s70
      %s90 = sphi 0, %s92
      %s93 = sphi 0, %s90
      %s94 = sphi 0, %s93
      %s110 = sphi 0, %s94
    $region4: #{tpu_custom_call.1} parent=1 // loop_header_branch
      %15 = sbr.rel (%p13) target = $region8
    $region5: #{tpu_custom_call.1} parent=1 // loop_body
      %s17 = ssub.s32 %s12, 1
      %s18 = ssub.s32 %s12, 2
      %s19 = sadd.s32 %s12, 1
      %s20 = ssub.s32 %s12, %s19
      %p21 = scmp.eq.s32.totalorder %s20, 0
      %s23 = sadd.s32 %s22, 1
      %s24 = scalar_select %p21, %s22, %s23
      %p27 = pneg %p21
      %p28 = scmp.eq.s32.totalorder %s12, 1
      %p29 = por %p27, %p28
      %p30 = scmp.ne.s32.totalorder %s22, %s25
      %p31 = scmp.eq.s32.totalorder %s12, 0
      %p32 = por %p30, %p31
      %p33 = scmp.ne.s32.totalorder %s22, %s25
      %p34 = scmp.eq.s32.totalorder %s17, 1
      %p35 = por %p33, %p34
      %p36 = scmp.ne.s32.totalorder %s25, %s26
      %p37 = scmp.eq.s32.totalorder %s17, 0
      %p38 = por %p36, %p37
      %p39 = scmp.ne.s32.totalorder %s25, %s26
      %p40 = scmp.eq.s32.totalorder %s18, 1
      %p41 = por %p39, %p40
      %p43 = scmp.ne.s32.totalorder %s26, %s42
      %p44 = scmp.eq.s32.totalorder %s18, 0
      %p45 = por %p43, %p44
      %s47 = sadd.s32 %s46, 1
      %p50 = scmp.eq.s32.totalorder %s12, 1
      %p51 = scmp.ne.s32.totalorder %s46, %s48
      %p52 = scmp.eq.s32.totalorder %s12, 0
      %p53 = por %p51, %p52
      %p54 = scmp.ne.s32.totalorder %s46, %s48
      %p55 = scmp.eq.s32.totalorder %s17, 1
      %p56 = por %p54, %p55
      %p57 = scmp.ne.s32.totalorder %s48, %s49
      %p58 = scmp.eq.s32.totalorder %s17, 0
      %p59 = por %p57, %p58
      %p60 = scmp.ne.s32.totalorder %s48, %s49
      %p61 = scmp.eq.s32.totalorder %s18, 1
      %p62 = por %p60, %p61
      %p64 = scmp.ne.s32.totalorder %s49, %s63
      %p65 = scmp.eq.s32.totalorder %s18, 0
      %p66 = por %p64, %p65
      %s68 = sadd.s32 %s67, 1
      %p71 = scmp.eq.s32.totalorder %s12, 1
      %p72 = scmp.ne.s32.totalorder %s67, %s69
      %p73 = scmp.eq.s32.totalorder %s12, 0
      %p74 = por %p72, %p73
      %p75 = scmp.ne.s32.totalorder %s67, %s69
      %p76 = scmp.eq.s32.totalorder %s17, 1
      %p77 = por %p75, %p76
      %p78 = scmp.ne.s32.totalorder %s69, %s70
      %p79 = scmp.eq.s32.totalorder %s17, 0
      %p80 = por %p78, %p79
      %p81 = scmp.ne.s32.totalorder %s69, %s70
      %p82 = scmp.eq.s32.totalorder %s18, 1
      %p83 = por %p81, %p82
      %p85 = scmp.ne.s32.totalorder %s70, %s84
      %p86 = scmp.eq.s32.totalorder %s18, 0
      %p87 = por %p85, %p86
      %s88 = ssub.s32 %s12, %s19
      %p89 = scmp.eq.s32.totalorder %s88, 0
      %s91 = sadd.s32 %s90, 1
      %s92 = scalar_select %p89, %s90, %s91
      %p95 = pneg %p89
      %p96 = scmp.eq.s32.totalorder %s12, 1
      %p97 = por %p95, %p96
      %p98 = scmp.ne.s32.totalorder %s90, %s93
      %p99 = scmp.eq.s32.totalorder %s12, 0
      %p100 = por %p98, %p99
      %p101 = scmp.ne.s32.totalorder %s90, %s93
      %p102 = scmp.eq.s32.totalorder %s17, 1
      %p103 = por %p101, %p102
      %p104 = scmp.ne.s32.totalorder %s93, %s94
      %p105 = scmp.eq.s32.totalorder %s17, 0
      %p106 = por %p104, %p105
      %p107 = scmp.ne.s32.totalorder %s93, %s94
      %p108 = scmp.eq.s32.totalorder %s18, 1
      %p109 = por %p107, %p108
      %p111 = scmp.ne.s32.totalorder %s94, %s110
      %p112 = scmp.eq.s32.totalorder %s18, 0
      %p113 = por %p111, %p112
      %p114 = scmp.le.s32.totalorder 1, %s12
      %p115 = scmp.lt.s32.totalorder %s12, 3
      %p116 = pnand %p114, %p115
      %p117 = pneg %p116
      // Predicated region
      $region9: #{tpu_custom_call.1} parent=5 // pred_check
        _
      $region10: #{tpu_custom_call.1} parent=5 // pred_check_branch
        %119 = sbr.rel (%p116) target = $region12
      $region11: #{tpu_custom_call.1} parent=5 // pred_region
        %s120 = ssub.s32 %s12, 1
        // Predicated region
        $region13: #{tpu_custom_call.1} parent=11 // pred_check
          %p121 = pneg %p59
        $region14: #{tpu_custom_call.1} parent=11 // pred_check_branch
          %123 = sbr.rel (%p121) target = $region16
        $region15: #{tpu_custom_call.1} parent=11 // pred_region
          _
        $region16: #{tpu_custom_call.1} parent=11 // pred_fallthru
          _
        // Predicated region
        $region17: #{tpu_custom_call.1} parent=11 // pred_check
          %p124 = pneg %p80
        $region18: #{tpu_custom_call.1} parent=11 // pred_check_branch
          %126 = sbr.rel (%p124) target = $region20
        $region19: #{tpu_custom_call.1} parent=11 // pred_region
          _
        $region20: #{tpu_custom_call.1} parent=11 // pred_fallthru
          _
      $region12: #{tpu_custom_call.1} parent=5 // pred_fallthru
        _
      %p127 = scmp.lt.s32.totalorder %s12, 2
      // Predicated region
      $region21: #{tpu_custom_call.1} parent=5 // pred_check
        %p128 = pneg %p127
      $region22: #{tpu_custom_call.1} parent=5 // pred_check_branch
        %130 = sbr.rel (%p128) target = $region24
      $region23: #{tpu_custom_call.1} parent=5 // pred_region
        // Predicated region
        $region25: #{tpu_custom_call.1} parent=23 // pred_check
          %p131 = pneg %p32
        $region26: #{tpu_custom_call.1} parent=23 // pred_check_branch
          %133 = sbr.rel (%p131) target = $region28
        $region27: #{tpu_custom_call.1} parent=23 // pred_region
          %p134 = scmp.lt.s32.totalorder %s12, 1
          %s135 = scalar_select %p134, %s12, 1
          %s136 = smul.addr %s135, 41
          %s137 = smul.addr %s136, 4
          %s138 = scalar_lea.vmem %s0, %s137
        $region28: #{tpu_custom_call.1} parent=23 // pred_fallthru
          _
      $region24: #{tpu_custom_call.1} parent=5 // pred_fallthru
        _
      %p139 = scmp.le.s32.totalorder 1, %s12
      %p140 = scmp.lt.s32.totalorder %s12, 3
      %p141 = pnand %p139, %p140
      %p142 = pneg %p141
      // Predicated region
      $region29: #{tpu_custom_call.1} parent=5 // pred_check
        _
      $region30: #{tpu_custom_call.1} parent=5 // pred_check_branch
        %144 = sbr.rel (%p141) target = $region32
      $region31: #{tpu_custom_call.1} parent=5 // pred_region
        %s145 = ssub.s32 %s12, 1
        %p146 = scmp.lt.s32.totalorder %s17, 1
        %s147 = scalar_select %p146, %s17, 1
        %s148 = smul.addr %s147, 41
        %s149 = smul.addr %s148, 4
        %s150 = scalar_lea.vmem %s0, %s149
        %p151 = pneg %p38
        %p152 = pneg %p35
        %p153 = pneg %p59
        %p154 = pneg %p56
        %p155 = pneg %p80
        %p156 = pneg %p77
        %p157 = pneg %p106
        %p158 = pneg %p103
        %s159 = sand.u32 %s93, 1
        %s160 = scalar_lea.sflag [#allocation3], %s159
        %s161 = sand.u32 %s93, 1
        %s162 = smul.addr %s161, 48
        %s163 = scalar_lea.vmem [#allocation2], %s162
        %p164 = scmp.lt.s32.totalorder %s17, 1
        %s165 = scalar_select %p164, %s17, 1
        %s166 = smul.addr %s165, 41
        %s167 = smul.addr %s166, 4
        %s168 = scalar_lea.vmem %s0, %s167
        %v169 = vld [vmem:[%s168] sm:$0xf]
        %v170 = vld [vmem:[%s168 + $0x4] sm:$0xf]
        %v171 = vld [vmem:[%s168 + $0x8] sm:$0xf]
        %v172 = vld [vmem:[%s168 + $0xc] sm:$0xf]
        %v173 = vld [vmem:[%s168 + $0x10] sm:$0xf]
        %v174 = vld [vmem:[%s168 + $0x14] sm:$0xf]
        %v175 = vld [vmem:[%s168 + $0x18] sm:$0xf]
        %v176 = vld [vmem:[%s168 + $0x1c] sm:$0xf]
        %v177 = vld [vmem:[%s168 + $0x20] sm:$0xf]
        %v178 = vld [vmem:[%s168 + $0x24] sm:$0xf]
        %v179 = vld [vmem:[%s168 + $0x28] sm:$0xf]
        %v180 = vld [vmem:[%s168 + $0x2c] sm:$0xf]
        %v181 = vld [vmem:[%s168 + $0x30] sm:$0xf]
        %v182 = vld [vmem:[%s168 + $0x34] sm:$0xf]
        %v183 = vld [vmem:[%s168 + $0x38] sm:$0xf]
        %v184 = vld [vmem:[%s168 + $0x3c] sm:$0xf]
        %v185 = vld [vmem:[%s168 + $0x40] sm:$0xf]
        %v186 = vld [vmem:[%s168 + $0x44] sm:$0xf]
        %v187 = vld [vmem:[%s168 + $0x48] sm:$0xf]
        %v188 = vld [vmem:[%s168 + $0x4c] sm:$0xf]
        %v189 = vld [vmem:[%s168 + $0x50] sm:$0xf]
        %v190 = vld [vmem:[%s168 + $0x54] sm:$0xf]
        %v191 = vld [vmem:[%s168 + $0x58] sm:$0xf]
        %v192 = vld [vmem:[%s168 + $0x5c] sm:$0xf]
        %v193 = vld [vmem:[%s168 + $0x60] sm:$0xf]
        %v194 = vld [vmem:[%s168 + $0x64] sm:$0xf]
        %v195 = vld [vmem:[%s168 + $0x68] sm:$0xf]
        %v196 = vld [vmem:[%s168 + $0x6c] sm:$0xf]
        %v197 = vld [vmem:[%s168 + $0x70] sm:$0xf]
        %v198 = vld [vmem:[%s168 + $0x74] sm:$0xf]
        %v199 = vld [vmem:[%s168 + $0x78] sm:$0xf]
        %v200 = vld [vmem:[%s168 + $0x7c] sm:$0xf]
        %v201 = vld [vmem:[%s168 + $0x80] sm:$0xf]
        %v202 = vld [vmem:[%s168 + $0x84] sm:$0xf]
        %v203 = vld [vmem:[%s168 + $0x88] sm:$0xf]
        %v204 = vld [vmem:[%s168 + $0x8c] sm:$0xf]
        %v205 = vld [vmem:[%s168 + $0x90] sm:$0xf]
        %v206 = vld [vmem:[%s168 + $0x94] sm:$0xf]
        %v207 = vld [vmem:[%s168 + $0x98] sm:$0xf]
        %v208 = vld [vmem:[%s168 + $0x9c] sm:$0xf]
        %v209 = vld [vmem:[%s168 + $0xa0] sm:$0x3]
        %v210 = vunpack.c.l.bf16 %v169
        %v211 = vunpack.c.l.bf16 %v170
        %v212 = vunpack.c.l.bf16 %v171
        %v213 = vunpack.c.l.bf16 %v172
        %v214 = vunpack.c.l.bf16 %v173
        %v215 = vunpack.c.l.bf16 %v174
        %v216 = vunpack.c.l.bf16 %v175
        %v217 = vunpack.c.l.bf16 %v176
        %v218 = vunpack.c.l.bf16 %v177
        %v219 = vunpack.c.l.bf16 %v178
        %v220 = vunpack.c.l.bf16 %v179
        %v221 = vunpack.c.l.bf16 %v180
        %v222 = vunpack.c.l.bf16 %v181
        %v223 = vunpack.c.l.bf16 %v182
        %v224 = vunpack.c.l.bf16 %v183
        %v225 = vunpack.c.l.bf16 %v184
        %v226 = vunpack.c.l.bf16 %v185
        %v227 = vunpack.c.l.bf16 %v186
        %v228 = vunpack.c.l.bf16 %v187
        %v229 = vunpack.c.l.bf16 %v188
        %v230 = vunpack.c.l.bf16 %v189
        %v231 = vunpack.c.l.bf16 %v190
        %v232 = vunpack.c.l.bf16 %v191
        %v233 = vunpack.c.l.bf16 %v192
        %v234 = vunpack.c.l.bf16 %v193
        %v235 = vunpack.c.l.bf16 %v194
        %v236 = vunpack.c.l.bf16 %v195
        %v237 = vunpack.c.l.bf16 %v196
        %v238 = vunpack.c.l.bf16 %v197
        %v239 = vunpack.c.l.bf16 %v198
        %v240 = vunpack.c.l.bf16 %v199
        %v241 = vunpack.c.l.bf16 %v200
        %v242 = vunpack.c.l.bf16 %v201
        %v243 = vunpack.c.l.bf16 %v202
        %v244 = vunpack.c.l.bf16 %v203
        %v245 = vunpack.c.l.bf16 %v204
        %v246 = vunpack.c.l.bf16 %v205
        %v247 = vunpack.c.l.bf16 %v206
        %v248 = vunpack.c.l.bf16 %v207
        %v249 = vunpack.c.l.bf16 %v208
        %v250 = vunpack.c.l.bf16 %v209
        %v251 = vld [vmem:[%s2] sm:$0xff]
        %v252 = vld [vmem:[%s2 + $0x8] sm:$0xff]
        %254 = vset.pattern.permute.xlu0 0
        %255 = vperm.xlu0 %254, %v251
        %v256 = vpop.permute.xlu0 %255
        %259 = vset.pattern.permute.xlu0 0
        %260 = vperm.xlu0 %259, %v252
        %v261 = vpop.permute.xlu0 %260
        %v263 = vld [vmem:[%s1] sm:$0xff]
        %v264 = vld [vmem:[%s1 + $0x8] sm:$0xff]
        %vm265 = vcmask 64512
        %v267 = vsel %vm265, %v263, 0
        %v270 = vsel %vm265, %v264, 0
        %v273 = vsel %vm265, %v210, 0
        %v276 = vsel %vm265, %v211, 0
        %v279 = vsel %vm265, %v212, 0
        %v282 = vsel %vm265, %v213, 0
        %v285 = vsel %vm265, %v214, 0
        %v288 = vsel %vm265, %v215, 0
        %v291 = vsel %vm265, %v216, 0
        %v294 = vsel %vm265, %v217, 0
        %v297 = vsel %vm265, %v218, 0
        %v300 = vsel %vm265, %v219, 0
        %v303 = vsel %vm265, %v220, 0
        %v306 = vsel %vm265, %v221, 0
        %v309 = vsel %vm265, %v222, 0
        %v312 = vsel %vm265, %v223, 0
        %v315 = vsel %vm265, %v224, 0
        %v318 = vsel %vm265, %v225, 0
        %v321 = vsel %vm265, %v226, 0
        %v324 = vsel %vm265, %v227, 0
        %v327 = vsel %vm265, %v228, 0
        %v330 = vsel %vm265, %v229, 0
        %v333 = vsel %vm265, %v230, 0
        %v336 = vsel %vm265, %v231, 0
        %v339 = vsel %vm265, %v232, 0
        %v342 = vsel %vm265, %v233, 0
        %v345 = vsel %vm265, %v234, 0
        %v348 = vsel %vm265, %v235, 0
        %v351 = vsel %vm265, %v236, 0
        %v354 = vsel %vm265, %v237, 0
        %v357 = vsel %vm265, %v238, 0
        %v360 = vsel %vm265, %v239, 0
        %v363 = vsel %vm265, %v240, 0
        %v366 = vsel %vm265, %v241, 0
        %v369 = vsel %vm265, %v242, 0
        %v372 = vsel %vm265, %v243, 0
        %v375 = vsel %vm265, %v244, 0
        %v378 = vsel %vm265, %v245, 0
        %380 = vmatprep.subr.mxu0 0.0
        %381 = vmatpush1.xpose.msra.mxu0 %v273
        %382 = vmatprep.subr.mxu0 0.0
        %383 = vmatpush1.xpose.msra.mxu0 %v276
        %384 = vmatprep.subr.mxu0 0.0
        %385 = vmatpush1.xpose.msra.mxu0 %v279
        %386 = vmatprep.subr.mxu0 0.0
        %387 = vmatpush1.xpose.msra.mxu0 %v282
        %388 = vmatprep.subr.mxu0 0.0
        %389 = vmatpush1.xpose.msra.mxu0 %v285
        %390 = vmatprep.subr.mxu0 0.0
        %391 = vmatpush1.xpose.msra.mxu0 %v288
        %392 = vmatprep.subr.mxu0 0.0
        %393 = vmatpush1.xpose.msra.mxu0 %v291
        %394 = vmatprep.subr.mxu0 0.0
        %395 = vmatpush1.xpose.msra.mxu0 %v294
        %396 = vmatprep.subr.mxu0 0.0
        %397 = vmatpush1.xpose.msra.mxu0 %v297
        %398 = vmatprep.subr.mxu0 0.0
        %399 = vmatpush1.xpose.msra.mxu0 %v300
        %400 = vmatprep.subr.mxu0 0.0
        %401 = vmatpush1.xpose.msra.mxu0 %v303
        %402 = vmatprep.subr.mxu0 0.0
        %403 = vmatpush1.xpose.msra.mxu0 %v306
        %404 = vmatprep.subr.mxu0 0.0
        %405 = vmatpush1.xpose.msra.mxu0 %v309
        %406 = vmatprep.subr.mxu0 0.0
        %407 = vmatpush1.xpose.msra.mxu0 %v312
        %408 = vmatprep.subr.mxu0 0.0
        %409 = vmatpush1.xpose.msra.mxu0 %v315
        %410 = vmatprep.subr.mxu0 0.0
        %411 = vmatpush1.xpose.msra.mxu0 %v318
        %412 = vmatprep.subr.mxu0 0.0
        %413 = vmatpush1.xpose.msra.mxu0 %v321
        %414 = vmatprep.subr.mxu0 0.0
        %415 = vmatpush1.xpose.msra.mxu0 %v324
        %416 = vmatprep.subr.mxu0 0.0
        %417 = vmatpush1.xpose.msra.mxu0 %v327
        %418 = vmatprep.subr.mxu0 0.0
        %419 = vmatpush1.xpose.msra.mxu0 %v330
        %420 = vmatprep.subr.mxu0 0.0
        %421 = vmatpush1.xpose.msra.mxu0 %v333
        %422 = vmatprep.subr.mxu0 0.0
        %423 = vmatpush1.xpose.msra.mxu0 %v336
        %424 = vmatprep.subr.mxu0 0.0
        %425 = vmatpush1.xpose.msra.mxu0 %v339
        %426 = vmatprep.subr.mxu0 0.0
        %427 = vmatpush1.xpose.msra.mxu0 %v342
        %428 = vmatprep.subr.mxu0 0.0
        %429 = vmatpush1.xpose.msra.mxu0 %v345
        %430 = vmatprep.subr.mxu0 0.0
        %431 = vmatpush1.xpose.msra.mxu0 %v348
        %432 = vmatprep.subr.mxu0 0.0
        %433 = vmatpush1.xpose.msra.mxu0 %v351
        %434 = vmatprep.subr.mxu0 0.0
        %435 = vmatpush1.xpose.msra.mxu0 %v354
        %436 = vmatprep.subr.mxu0 0.0
        %437 = vmatpush1.xpose.msra.mxu0 %v357
        %438 = vmatprep.subr.mxu0 0.0
        %439 = vmatpush1.xpose.msra.mxu0 %v360
        %440 = vmatprep.subr.mxu0 0.0
        %441 = vmatpush1.xpose.msra.mxu0 %v363
        %442 = vmatprep.subr.mxu0 0.0
        %443 = vmatpush1.xpose.msra.mxu0 %v366
        %444 = vmatprep.mubr.f32.mxu0 0.0
        %445 = vmatmul.mubr.f32.gmra.mrb[0].mxu0 %v267
        %v446 = vpop.f32.mrb[0].mxu0
        %v447 = vadd.f32 0.0, %v446
        %v448 = vpop.f32.mrb[0].mxu0
        %v449 = vadd.f32 0.0, %v448
        %450 = vmatprep.mubr.f32.mxu0 0.0
        %451 = vmatmul.mubr.f32.gmra.mrb[0].mxu0 %v270
        %v452 = vpop.f32.mrb[0].mxu0
        %v453 = vadd.f32 0.0, %v452
        %v454 = vpop.f32.mrb[0].mxu0
        %v455 = vadd.f32 0.0, %v454
        %456 = vdwg.mxu0
        %457 = vmatprep.subr.mxu0 0.0
        %458 = vmatpush1.xpose.msra.mxu0 %v369
        %459 = vmatprep.subr.mxu0 0.0
        %460 = vmatpush1.xpose.msra.mxu0 %v372
        %461 = vmatprep.subr.mxu0 0.0
        %462 = vmatpush1.xpose.msra.mxu0 %v375
        %463 = vmatprep.subr.mxu0 0.0
        %464 = vmatpush1.xpose.msra.mxu0 %v378
        %465 = vmatprep.subr.mxu0 0.0
        %466 = vmatpush1.xpose.msra.mxu0 0.0
        %467 = vmatprep.subr.mxu0 0.0
        %468 = vmatpush1.xpose.msra.mxu0 0.0
        %469 = vmatprep.subr.mxu0 0.0
        %470 = vmatpush1.xpose.msra.mxu0 0.0
        %471 = vmatprep.subr.mxu0 0.0
        %472 = vmatpush1.xpose.msra.mxu0 0.0
        %473 = vmatprep.subr.mxu0 0.0
        %474 = vmatpush1.xpose.msra.mxu0 0.0
        %475 = vmatprep.subr.mxu0 0.0
        %476 = vmatpush1.xpose.msra.mxu0 0.0
        %477 = vmatprep.subr.mxu0 0.0
        %478 = vmatpush1.xpose.msra.mxu0 0.0
        %479 = vmatprep.subr.mxu0 0.0
        %480 = vmatpush1.xpose.msra.mxu0 0.0
        %481 = vmatprep.subr.mxu0 0.0
        %482 = vmatpush1.xpose.msra.mxu0 0.0
        %483 = vmatprep.subr.mxu0 0.0
        %484 = vmatpush1.xpose.msra.mxu0 0.0
        %485 = vmatprep.subr.mxu0 0.0
        %486 = vmatpush1.xpose.msra.mxu0 0.0
        %487 = vmatprep.subr.mxu0 0.0
        %488 = vmatpush1.xpose.msra.mxu0 0.0
        %489 = vmatprep.subr.mxu0 0.0
        %490 = vmatpush1.xpose.msra.mxu0 0.0
        %491 = vmatprep.subr.mxu0 0.0
        %492 = vmatpush1.xpose.msra.mxu0 0.0
        %493 = vmatprep.subr.mxu0 0.0
        %494 = vmatpush1.xpose.msra.mxu0 0.0
        %495 = vmatprep.subr.mxu0 0.0
        %496 = vmatpush1.xpose.msra.mxu0 0.0
        %497 = vmatprep.subr.mxu0 0.0
        %498 = vmatpush1.xpose.msra.mxu0 0.0
        %499 = vmatprep.subr.mxu0 0.0
        %500 = vmatpush1.xpose.msra.mxu0 0.0
        %501 = vmatprep.subr.mxu0 0.0
        %502 = vmatpush1.xpose.msra.mxu0 0.0
        %503 = vmatprep.subr.mxu0 0.0
        %504 = vmatpush1.xpose.msra.mxu0 0.0
        %505 = vmatprep.subr.mxu0 0.0
        %506 = vmatpush1.xpose.msra.mxu0 0.0
        %507 = vmatprep.subr.mxu0 0.0
        %508 = vmatpush1.xpose.msra.mxu0 0.0
        %509 = vmatprep.subr.mxu0 0.0
        %510 = vmatpush1.xpose.msra.mxu0 0.0
        %511 = vmatprep.subr.mxu0 0.0
        %512 = vmatpush1.xpose.msra.mxu0 0.0
        %513 = vmatprep.subr.mxu0 0.0
        %514 = vmatpush1.xpose.msra.mxu0 0.0
        %515 = vmatprep.subr.mxu0 0.0
        %516 = vmatpush1.xpose.msra.mxu0 0.0
        %517 = vmatprep.subr.mxu0 0.0
        %518 = vmatpush1.xpose.msra.mxu0 0.0
        %519 = vmatprep.subr.mxu0 0.0
        %520 = vmatpush1.xpose.msra.mxu0 0.0
        %521 = vmatprep.mubr.f32.mxu0 0.0
        %522 = vmatmul.mubr.f32.gmra.mrb[0].mxu0 %v267
        %v523 = vpop.f32.mrb[0].mxu0
        %v524 = vadd.f32 0.0, %v523
        %v525 = vpop.f32.mrb[0].mxu0
        %526 = vmatprep.mubr.f32.mxu0 0.0
        %527 = vmatmul.mubr.f32.gmra.mrb[0].mxu0 %v270
        %v528 = vpop.f32.mrb[0].mxu0
        %v529 = vadd.f32 0.0, %v528
        %v530 = vpop.f32.mrb[0].mxu0
        %531 = vdwg.mxu0
        %v532 = vadd.f32 %v256, %v447
        %v533 = vadd.f32 %v256, %v449
        %v534 = vadd.f32 %v256, %v524
        %v535 = vadd.f32 %v261, %v453
        %v536 = vadd.f32 %v261, %v455
        %v537 = vadd.f32 %v261, %v529
        %s538 = scalar_lea.vmem %s1, 16
        %v539 = vld [vmem:[%s538] sm:$0xff]
        %v540 = vld [vmem:[%s538 + $0x8] sm:$0xff]
        %vm541 = vcmask 1046528
        %v542 = vrot.slane %v210, 1
        %v543 = vrot.slane %v211, 1
        %v544 = vsel %vm541, %v542, %v543
        %v545 = vrot.slane %v212, 1
        %v546 = vsel %vm541, %v543, %v545
        %v547 = vrot.slane %v213, 1
        %v548 = vsel %vm541, %v545, %v547
        %v549 = vrot.slane %v214, 1
        %v550 = vsel %vm541, %v547, %v549
        %v551 = vrot.slane %v215, 1
        %v552 = vsel %vm541, %v549, %v551
        %v553 = vrot.slane %v216, 1
        %v554 = vsel %vm541, %v551, %v553
        %v555 = vrot.slane %v217, 1
        %v556 = vsel %vm541, %v553, %v555
        %v557 = vrot.slane %v218, 1
        %v558 = vsel %vm541, %v555, %v557
        %v559 = vrot.slane %v219, 1
        %v560 = vsel %vm541, %v557, %v559
        %v561 = vrot.slane %v220, 1
        %v562 = vsel %vm541, %v559, %v561
        %v563 = vrot.slane %v221, 1
        %v564 = vsel %vm541, %v561, %v563
        %v565 = vrot.slane %v222, 1
        %v566 = vsel %vm541, %v563, %v565
        %v567 = vrot.slane %v223, 1
        %v568 = vsel %vm541, %v565, %v567
        %v569 = vrot.slane %v224, 1
        %v570 = vsel %vm541, %v567, %v569
        %v571 = vrot.slane %v225, 1
        %v572 = vsel %vm541, %v569, %v571
        %v573 = vrot.slane %v226, 1
        %v574 = vsel %vm541, %v571, %v573
        %v575 = vrot.slane %v227, 1
        %v576 = vsel %vm541, %v573, %v575
        %v577 = vrot.slane %v228, 1
        %v578 = vsel %vm541, %v575, %v577
        %v579 = vrot.slane %v229, 1
        %v580 = vsel %vm541, %v577, %v579
        %v581 = vrot.slane %v230, 1
        %v582 = vsel %vm541, %v579, %v581
        %v583 = vrot.slane %v231, 1
        %v584 = vsel %vm541, %v581, %v583
        %v585 = vrot.slane %v232, 1
        %v586 = vsel %vm541, %v583, %v585
        %v587 = vrot.slane %v233, 1
        %v588 = vsel %vm541, %v585, %v587
        %v589 = vrot.slane %v234, 1
        %v590 = vsel %vm541, %v587, %v589
        %v591 = vrot.slane %v235, 1
        %v592 = vsel %vm541, %v589, %v591
        %v593 = vrot.slane %v236, 1
        %v594 = vsel %vm541, %v591, %v593
        %v595 = vrot.slane %v237, 1
        %v596 = vsel %vm541, %v593, %v595
        %v597 = vrot.slane %v238, 1
        %v598 = vsel %vm541, %v595, %v597
        %v599 = vrot.slane %v239, 1
        %v600 = vsel %vm541, %v597, %v599
        %v601 = vrot.slane %v240, 1
        %v602 = vsel %vm541, %v599, %v601
        %v603 = vrot.slane %v241, 1
        %v604 = vsel %vm541, %v601, %v603
        %v605 = vrot.slane %v242, 1
        %v606 = vsel %vm541, %v603, %v605
        %v607 = vrot.slane %v243, 1
        %v608 = vsel %vm541, %v605, %v607
        %v609 = vrot.slane %v244, 1
        %v610 = vsel %vm541, %v607, %v609
        %v611 = vrot.slane %v245, 1
        %v612 = vsel %vm541, %v609, %v611
        %v614 = vsel %vm265, %v539, 0
        %v617 = vsel %vm265, %v540, 0
        %v619 = vsel %vm265, %v544, 0
        %v621 = vsel %vm265, %v546, 0
        %v623 = vsel %vm265, %v548, 0
        %v625 = vsel %vm265, %v550, 0
        %v627 = vsel %vm265, %v552, 0
        %v629 = vsel %vm265, %v554, 0
        %v631 = vsel %vm265, %v556, 0
        %v633 = vsel %vm265, %v558, 0
        %v635 = vsel %vm265, %v560, 0
        %v637 = vsel %vm265, %v562, 0
        %v639 = vsel %vm265, %v564, 0
        %v641 = vsel %vm265, %v566, 0
        %v643 = vsel %vm265, %v568, 0
        %v645 = vsel %vm265, %v570, 0
        %v647 = vsel %vm265, %v572, 0
        %v649 = vsel %vm265, %v574, 0
        %v651 = vsel %vm265, %v576, 0
        %v653 = vsel %vm265, %v578, 0
        %v655 = vsel %vm265, %v580, 0
        %v657 = vsel %vm265, %v582, 0
        %v659 = vsel %vm265, %v584, 0
        %v661 = vsel %vm265, %v586, 0
        %v663 = vsel %vm265, %v588, 0
        %v665 = vsel %vm265, %v590, 0
        %v667 = vsel %vm265, %v592, 0
        %v669 = vsel %vm265, %v594, 0
        %v671 = vsel %vm265, %v596, 0
        %v673 = vsel %vm265, %v598, 0
        %v675 = vsel %vm265, %v600, 0
        %v677 = vsel %vm265, %v602, 0
        %v679 = vsel %vm265, %v604, 0
        %v681 = vsel %vm265, %v606, 0
        %v683 = vsel %vm265, %v608, 0
        %v685 = vsel %vm265, %v610, 0
        %v687 = vsel %vm265, %v612, 0
        %v689 = vsel %vm265, %v611, 0
        %691 = vmatprep.subr.mxu0 0.0
        %692 = vmatpush1.xpose.msra.mxu0 %v619
        %693 = vmatprep.subr.mxu0 0.0
        %694 = vmatpush1.xpose.msra.mxu0 %v621
        %695 = vmatprep.subr.mxu0 0.0
        %696 = vmatpush1.xpose.msra.mxu0 %v623
        %697 = vmatprep.subr.mxu0 0.0
        %698 = vmatpush1.xpose.msra.mxu0 %v625
        %699 = vmatprep.subr.mxu0 0.0
        %700 = vmatpush1.xpose.msra.mxu0 %v627
        %701 = vmatprep.subr.mxu0 0.0
        %702 = vmatpush1.xpose.msra.mxu0 %v629
        %703 = vmatprep.subr.mxu0 0.0
        %704 = vmatpush1.xpose.msra.mxu0 %v631
        %705 = vmatprep.subr.mxu0 0.0
        %706 = vmatpush1.xpose.msra.mxu0 %v633
        %707 = vmatprep.subr.mxu0 0.0
        %708 = vmatpush1.xpose.msra.mxu0 %v635
        %709 = vmatprep.subr.mxu0 0.0
        %710 = vmatpush1.xpose.msra.mxu0 %v637
        %711 = vmatprep.subr.mxu0 0.0
        %712 = vmatpush1.xpose.msra.mxu0 %v639
        %713 = vmatprep.subr.mxu0 0.0
        %714 = vmatpush1.xpose.msra.mxu0 %v641
        %715 = vmatprep.subr.mxu0 0.0
        %716 = vmatpush1.xpose.msra.mxu0 %v643
        %717 = vmatprep.subr.mxu0 0.0
        %718 = vmatpush1.xpose.msra.mxu0 %v645
        %719 = vmatprep.subr.mxu0 0.0
        %720 = vmatpush1.xpose.msra.mxu0 %v647
        %721 = vmatprep.subr.mxu0 0.0
        %722 = vmatpush1.xpose.msra.mxu0 %v649
        %723 = vmatprep.subr.mxu0 0.0
        %724 = vmatpush1.xpose.msra.mxu0 %v651
        %725 = vmatprep.subr.mxu0 0.0
        %726 = vmatpush1.xpose.msra.mxu0 %v653
        %727 = vmatprep.subr.mxu0 0.0
        %728 = vmatpush1.xpose.msra.mxu0 %v655
        %729 = vmatprep.subr.mxu0 0.0
        %730 = vmatpush1.xpose.msra.mxu0 %v657
        %731 = vmatprep.subr.mxu0 0.0
        %732 = vmatpush1.xpose.msra.mxu0 %v659
        %733 = vmatprep.subr.mxu0 0.0
        %734 = vmatpush1.xpose.msra.mxu0 %v661
        %735 = vmatprep.subr.mxu0 0.0
        %736 = vmatpush1.xpose.msra.mxu0 %v663
        %737 = vmatprep.subr.mxu0 0.0
        %738 = vmatpush1.xpose.msra.mxu0 %v665
        %739 = vmatprep.subr.mxu0 0.0
        %740 = vmatpush1.xpose.msra.mxu0 %v667
        %741 = vmatprep.subr.mxu0 0.0
        %742 = vmatpush1.xpose.msra.mxu0 %v669
        %743 = vmatprep.subr.mxu0 0.0
        %744 = vmatpush1.xpose.msra.mxu0 %v671
        %745 = vmatprep.subr.mxu0 0.0
        %746 = vmatpush1.xpose.msra.mxu0 %v673
        %747 = vmatprep.subr.mxu0 0.0
        %748 = vmatpush1.xpose.msra.mxu0 %v675
        %749 = vmatprep.subr.mxu0 0.0
        %750 = vmatpush1.xpose.msra.mxu0 %v677
        %751 = vmatprep.subr.mxu0 0.0
        %752 = vmatpush1.xpose.msra.mxu0 %v679
        %753 = vmatprep.subr.mxu0 0.0
        %754 = vmatpush1.xpose.msra.mxu0 %v681
        %755 = vmatprep.mubr.f32.mxu0 0.0
        %756 = vmatmul.mubr.f32.gmra.mrb[0].mxu0 %v614
        %v757 = vpop.f32.mrb[0].mxu0
        %v758 = vadd.f32 0.0, %v757
        %v759 = vpop.f32.mrb[0].mxu0
        %v760 = vadd.f32 0.0, %v759
        %761 = vmatprep.mubr.f32.mxu0 0.0
        %762 = vmatmul.mubr.f32.gmra.mrb[0].mxu0 %v617
        %v763 = vpop.f32.mrb[0].mxu0
        %v764 = vadd.f32 0.0, %v763
        %v765 = vpop.f32.mrb[0].mxu0
        %v766 = vadd.f32 0.0, %v765
        %767 = vdwg.mxu0
        %768 = vmatprep.subr.mxu0 0.0
        %769 = vmatpush1.xpose.msra.mxu0 %v683
        %770 = vmatprep.subr.mxu0 0.0
        %771 = vmatpush1.xpose.msra.mxu0 %v685
        %772 = vmatprep.subr.mxu0 0.0
        %773 = vmatpush1.xpose.msra.mxu0 %v687
        %774 = vmatprep.subr.mxu0 0.0
        %775 = vmatpush1.xpose.msra.mxu0 %v689
        %776 = vmatprep.subr.mxu0 0.0
        %777 = vmatpush1.xpose.msra.mxu0 0.0
        %778 = vmatprep.subr.mxu0 0.0
        %779 = vmatpush1.xpose.msra.mxu0 0.0
        %780 = vmatprep.subr.mxu0 0.0
        %781 = vmatpush1.xpose.msra.mxu0 0.0
        %782 = vmatprep.subr.mxu0 0.0
        %783 = vmatpush1.xpose.msra.mxu0 0.0
        %784 = vmatprep.subr.mxu0 0.0
        %785 = vmatpush1.xpose.msra.mxu0 0.0
        %786 = vmatprep.subr.mxu0 0.0
        %787 = vmatpush1.xpose.msra.mxu0 0.0
        %788 = vmatprep.subr.mxu0 0.0
        %789 = vmatpush1.xpose.msra.mxu0 0.0
        %790 = vmatprep.subr.mxu0 0.0
        %791 = vmatpush1.xpose.msra.mxu0 0.0
        %792 = vmatprep.subr.mxu0 0.0
        %793 = vmatpush1.xpose.msra.mxu0 0.0
        %794 = vmatprep.subr.mxu0 0.0
        %795 = vmatpush1.xpose.msra.mxu0 0.0
        %796 = vmatprep.subr.mxu0 0.0
        %797 = vmatpush1.xpose.msra.mxu0 0.0
        %798 = vmatprep.subr.mxu0 0.0
        %799 = vmatpush1.xpose.msra.mxu0 0.0
        %800 = vmatprep.subr.mxu0 0.0
        %801 = vmatpush1.xpose.msra.mxu0 0.0
        %802 = vmatprep.subr.mxu0 0.0
        %803 = vmatpush1.xpose.msra.mxu0 0.0
        %804 = vmatprep.subr.mxu0 0.0
        %805 = vmatpush1.xpose.msra.mxu0 0.0
        %806 = vmatprep.subr.mxu0 0.0
        %807 = vmatpush1.xpose.msra.mxu0 0.0
        %808 = vmatprep.subr.mxu0 0.0
        %809 = vmatpush1.xpose.msra.mxu0 0.0
        %810 = vmatprep.subr.mxu0 0.0
        %811 = vmatpush1.xpose.msra.mxu0 0.0
        %812 = vmatprep.subr.mxu0 0.0
        %813 = vmatpush1.xpose.msra.mxu0 0.0
        %814 = vmatprep.subr.mxu0 0.0
        %815 = vmatpush1.xpose.msra.mxu0 0.0
        %816 = vmatprep.subr.mxu0 0.0
        %817 = vmatpush1.xpose.msra.mxu0 0.0
        %818 = vmatprep.subr.mxu0 0.0
        %819 = vmatpush1.xpose.msra.mxu0 0.0
        %820 = vmatprep.subr.mxu0 0.0
        %821 = vmatpush1.xpose.msra.mxu0 0.0
        %822 = vmatprep.subr.mxu0 0.0
        %823 = vmatpush1.xpose.msra.mxu0 0.0
        %824 = vmatprep.subr.mxu0 0.0
        %825 = vmatpush1.xpose.msra.mxu0 0.0
        %826 = vmatprep.subr.mxu0 0.0
        %827 = vmatpush1.xpose.msra.mxu0 0.0
        %828 = vmatprep.subr.mxu0 0.0
        %829 = vmatpush1.xpose.msra.mxu0 0.0
        %830 = vmatprep.subr.mxu0 0.0
        %831 = vmatpush1.xpose.msra.mxu0 0.0
        %832 = vmatprep.mubr.f32.mxu0 0.0
        %833 = vmatmul.mubr.f32.gmra.mrb[0].mxu0 %v614
        %v834 = vpop.f32.mrb[0].mxu0
        %v835 = vadd.f32 0.0, %v834
        %v836 = vpop.f32.mrb[0].mxu0
        %837 = vmatprep.mubr.f32.mxu0 0.0
        %838 = vmatmul.mubr.f32.gmra.mrb[0].mxu0 %v617
        %v839 = vpop.f32.mrb[0].mxu0
        %v840 = vadd.f32 0.0, %v839
        %v841 = vpop.f32.mrb[0].mxu0
        %842 = vdwg.mxu0
        %v843 = vadd.f32 %v532, %v758
        %v844 = vadd.f32 %v533, %v760
        %v845 = vadd.f32 %v534, %v835
        %v846 = vadd.f32 %v535, %v764
        %v847 = vadd.f32 %v536, %v766
        %v848 = vadd.f32 %v537, %v840
        %s849 = scalar_lea.vmem %s1, 32
        %v850 = vld [vmem:[%s849] sm:$0xff]
        %v851 = vld [vmem:[%s849 + $0x8] sm:$0xff]
        %vm852 = vcmask 1045504
        %v853 = vrot.slane %v210, 2
        %v854 = vrot.slane %v211, 2
        %v855 = vsel %vm852, %v853, %v854
        %v856 = vrot.slane %v212, 2
        %v857 = vsel %vm852, %v854, %v856
        %v858 = vrot.slane %v213, 2
        %v859 = vsel %vm852, %v856, %v858
        %v860 = vrot.slane %v214, 2
        %v861 = vsel %vm852, %v858, %v860
        %v862 = vrot.slane %v215, 2
        %v863 = vsel %vm852, %v860, %v862
        %v864 = vrot.slane %v216, 2
        %v865 = vsel %vm852, %v862, %v864
        %v866 = vrot.slane %v217, 2
        %v867 = vsel %vm852, %v864, %v866
        %v868 = vrot.slane %v218, 2
        %v869 = vsel %vm852, %v866, %v868
        %v870 = vrot.slane %v219, 2
        %v871 = vsel %vm852, %v868, %v870
        %v872 = vrot.slane %v220, 2
        %v873 = vsel %vm852, %v870, %v872
        %v874 = vrot.slane %v221, 2
        %v875 = vsel %vm852, %v872, %v874
        %v876 = vrot.slane %v222, 2
        %v877 = vsel %vm852, %v874, %v876
        %v878 = vrot.slane %v223, 2
        %v879 = vsel %vm852, %v876, %v878
        %v880 = vrot.slane %v224, 2
        %v881 = vsel %vm852, %v878, %v880
        %v882 = vrot.slane %v225, 2
        %v883 = vsel %vm852, %v880, %v882
        %v884 = vrot.slane %v226, 2
        %v885 = vsel %vm852, %v882, %v884
        %v886 = vrot.slane %v227, 2
        %v887 = vsel %vm852, %v884, %v886
        %v888 = vrot.slane %v228, 2
        %v889 = vsel %vm852, %v886, %v888
        %v890 = vrot.slane %v229, 2
        %v891 = vsel %vm852, %v888, %v890
        %v892 = vrot.slane %v230, 2
        %v893 = vsel %vm852, %v890, %v892
        %v894 = vrot.slane %v231, 2
        %v895 = vsel %vm852, %v892, %v894
        %v896 = vrot.slane %v232, 2
        %v897 = vsel %vm852, %v894, %v896
        %v898 = vrot.slane %v233, 2
        %v899 = vsel %vm852, %v896, %v898
        %v900 = vrot.slane %v234, 2
        %v901 = vsel %vm852, %v898, %v900
        %v902 = vrot.slane %v235, 2
        %v903 = vsel %vm852, %v900, %v902
        %v904 = vrot.slane %v236, 2
        %v905 = vsel %vm852, %v902, %v904
        %v906 = vrot.slane %v237, 2
        %v907 = vsel %vm852, %v904, %v906
        %v908 = vrot.slane %v238, 2
        %v909 = vsel %vm852, %v906, %v908
        %v910 = vrot.slane %v239, 2
        %v911 = vsel %vm852, %v908, %v910
        %v912 = vrot.slane %v240, 2
        %v913 = vsel %vm852, %v910, %v912
        %v914 = vrot.slane %v241, 2
        %v915 = vsel %vm852, %v912, %v914
        %v916 = vrot.slane %v242, 2
        %v917 = vsel %vm852, %v914, %v916
        %v918 = vrot.slane %v243, 2
        %v919 = vsel %vm852, %v916, %v918
        %v920 = vrot.slane %v244, 2
        %v921 = vsel %vm852, %v918, %v920
        %v922 = vrot.slane %v245, 2
        %v923 = vsel %vm852, %v920, %v922
        %v925 = vsel %vm265, %v850, 0
        %v928 = vsel %vm265, %v851, 0
        %v930 = vsel %vm265, %v855, 0
        %v932 = vsel %vm265, %v857, 0
        %v934 = vsel %vm265, %v859, 0
        %v936 = vsel %vm265, %v861, 0
        %v938 = vsel %vm265, %v863, 0
        %v940 = vsel %vm265, %v865, 0
        %v942 = vsel %vm265, %v867, 0
        %v944 = vsel %vm265, %v869, 0
        %v946 = vsel %vm265, %v871, 0
        %v948 = vsel %vm265, %v873, 0
        %v950 = vsel %vm265, %v875, 0
        %v952 = vsel %vm265, %v877, 0
        %v954 = vsel %vm265, %v879, 0
        %v956 = vsel %vm265, %v881, 0
        %v958 = vsel %vm265, %v883, 0
        %v960 = vsel %vm265, %v885, 0
        %v962 = vsel %vm265, %v887, 0
        %v964 = vsel %vm265, %v889, 0
        %v966 = vsel %vm265, %v891, 0
        %v968 = vsel %vm265, %v893, 0
        %v970 = vsel %vm265, %v895, 0
        %v972 = vsel %vm265, %v897, 0
        %v974 = vsel %vm265, %v899, 0
        %v976 = vsel %vm265, %v901, 0
        %v978 = vsel %vm265, %v903, 0
        %v980 = vsel %vm265, %v905, 0
        %v982 = vsel %vm265, %v907, 0
        %v984 = vsel %vm265, %v909, 0
        %v986 = vsel %vm265, %v911, 0
        %v988 = vsel %vm265, %v913, 0
        %v990 = vsel %vm265, %v915, 0
        %v992 = vsel %vm265, %v917, 0
        %v994 = vsel %vm265, %v919, 0
        %v996 = vsel %vm265, %v921, 0
        %v998 = vsel %vm265, %v923, 0
        %v1000 = vsel %vm265, %v922, 0
        %1002 = vmatprep.subr.mxu0 0.0
        %1003 = vmatpush1.xpose.msra.mxu0 %v930
        %1004 = vmatprep.subr.mxu0 0.0
        %1005 = vmatpush1.xpose.msra.mxu0 %v932
        %1006 = vmatprep.subr.mxu0 0.0
        %1007 = vmatpush1.xpose.msra.mxu0 %v934
        %1008 = vmatprep.subr.mxu0 0.0
        %1009 = vmatpush1.xpose.msra.mxu0 %v936
        %1010 = vmatprep.subr.mxu0 0.0
        %1011 = vmatpush1.xpose.msra.mxu0 %v938
        %1012 = vmatprep.subr.mxu0 0.0
        %1013 = vmatpush1.xpose.msra.mxu0 %v940
        %1014 = vmatprep.subr.mxu0 0.0
        %1015 = vmatpush1.xpose.msra.mxu0 %v942
        %1016 = vmatprep.subr.mxu0 0.0
        %1017 = vmatpush1.xpose.msra.mxu0 %v944
        %1018 = vmatprep.subr.mxu0 0.0
        %1019 = vmatpush1.xpose.msra.mxu0 %v946
        %1020 = vmatprep.subr.mxu0 0.0
        %1021 = vmatpush1.xpose.msra.mxu0 %v948
        %1022 = vmatprep.subr.mxu0 0.0
        %1023 = vmatpush1.xpose.msra.mxu0 %v950
        %1024 = vmatprep.subr.mxu0 0.0
        %1025 = vmatpush1.xpose.msra.mxu0 %v952
        %1026 = vmatprep.subr.mxu0 0.0
        %1027 = vmatpush1.xpose.msra.mxu0 %v954
        %1028 = vmatprep.subr.mxu0 0.0
        %1029 = vmatpush1.xpose.msra.mxu0 %v956
        %1030 = vmatprep.subr.mxu0 0.0
        %1031 = vmatpush1.xpose.msra.mxu0 %v958
        %1032 = vmatprep.subr.mxu0 0.0
        %1033 = vmatpush1.xpose.msra.mxu0 %v960
        %1034 = vmatprep.subr.mxu0 0.0
        %1035 = vmatpush1.xpose.msra.mxu0 %v962
        %1036 = vmatprep.subr.mxu0 0.0
        %1037 = vmatpush1.xpose.msra.mxu0 %v964
        %1038 = vmatprep.subr.mxu0 0.0
        %1039 = vmatpush1.xpose.msra.mxu0 %v966
        %1040 = vmatprep.subr.mxu0 0.0
        %1041 = vmatpush1.xpose.msra.mxu0 %v968
        %1042 = vmatprep.subr.mxu0 0.0
        %1043 = vmatpush1.xpose.msra.mxu0 %v970
        %1044 = vmatprep.subr.mxu0 0.0
        %1045 = vmatpush1.xpose.msra.mxu0 %v972
        %1046 = vmatprep.subr.mxu0 0.0
        %1047 = vmatpush1.xpose.msra.mxu0 %v974
        %1048 = vmatprep.subr.mxu0 0.0
        %1049 = vmatpush1.xpose.msra.mxu0 %v976
        %1050 = vmatprep.subr.mxu0 0.0
        %1051 = vmatpush1.xpose.msra.mxu0 %v978
        %1052 = vmatprep.subr.mxu0 0.0
        %1053 = vmatpush1.xpose.msra.mxu0 %v980
        %1054 = vmatprep.subr.mxu0 0.0
        %1055 = vmatpush1.xpose.msra.mxu0 %v982
        %1056 = vmatprep.subr.mxu0 0.0
        %1057 = vmatpush1.xpose.msra.mxu0 %v984
        %1058 = vmatprep.subr.mxu0 0.0
        %1059 = vmatpush1.xpose.msra.mxu0 %v986
        %1060 = vmatprep.subr.mxu0 0.0
        %1061 = vmatpush1.xpose.msra.mxu0 %v988
        %1062 = vmatprep.subr.mxu0 0.0
        %1063 = vmatpush1.xpose.msra.mxu0 %v990
        %1064 = vmatprep.subr.mxu0 0.0
        %1065 = vmatpush1.xpose.msra.mxu0 %v992
        %1066 = vmatprep.mubr.f32.mxu0 0.0
        %1067 = vmatmul.mubr.f32.gmra.mrb[0].mxu0 %v925
        %v1068 = vpop.f32.mrb[0].mxu0
        %v1069 = vadd.f32 0.0, %v1068
        %v1070 = vpop.f32.mrb[0].mxu0
        %v1071 = vadd.f32 0.0, %v1070
        %1072 = vmatprep.mubr.f32.mxu0 0.0
        %1073 = vmatmul.mubr.f32.gmra.mrb[0].mxu0 %v928
        %v1074 = vpop.f32.mrb[0].mxu0
        %v1075 = vadd.f32 0.0, %v1074
        %v1076 = vpop.f32.mrb[0].mxu0
        %v1077 = vadd.f32 0.0, %v1076
        %1078 = vdwg.mxu0
        %1079 = vmatprep.subr.mxu0 0.0
        %1080 = vmatpush1.xpose.msra.mxu0 %v994
        %1081 = vmatprep.subr.mxu0 0.0
        %1082 = vmatpush1.xpose.msra.mxu0 %v996
        %1083 = vmatprep.subr.mxu0 0.0
        %1084 = vmatpush1.xpose.msra.mxu0 %v998
        %1085 = vmatprep.subr.mxu0 0.0
        %1086 = vmatpush1.xpose.msra.mxu0 %v1000
        %1087 = vmatprep.subr.mxu0 0.0
        %1088 = vmatpush1.xpose.msra.mxu0 0.0
        %1089 = vmatprep.subr.mxu0 0.0
        %1090 = vmatpush1.xpose.msra.mxu0 0.0
        %1091 = vmatprep.subr.mxu0 0.0
        %1092 = vmatpush1.xpose.msra.mxu0 0.0
        %1093 = vmatprep.subr.mxu0 0.0
        %1094 = vmatpush1.xpose.msra.mxu0 0.0
        %1095 = vmatprep.subr.mxu0 0.0
        %1096 = vmatpush1.xpose.msra.mxu0 0.0
        %1097 = vmatprep.subr.mxu0 0.0
        %1098 = vmatpush1.xpose.msra.mxu0 0.0
        %1099 = vmatprep.subr.mxu0 0.0
        %1100 = vmatpush1.xpose.msra.mxu0 0.0
        %1101 = vmatprep.subr.mxu0 0.0
        %1102 = vmatpush1.xpose.msra.mxu0 0.0
        %1103 = vmatprep.subr.mxu0 0.0
        %1104 = vmatpush1.xpose.msra.mxu0 0.0
        %1105 = vmatprep.subr.mxu0 0.0
        %1106 = vmatpush1.xpose.msra.mxu0 0.0
        %1107 = vmatprep.subr.mxu0 0.0
        %1108 = vmatpush1.xpose.msra.mxu0 0.0
        %1109 = vmatprep.subr.mxu0 0.0
        %1110 = vmatpush1.xpose.msra.mxu0 0.0
        %1111 = vmatprep.subr.mxu0 0.0
        %1112 = vmatpush1.xpose.msra.mxu0 0.0
        %1113 = vmatprep.subr.mxu0 0.0
        %1114 = vmatpush1.xpose.msra.mxu0 0.0
        %1115 = vmatprep.subr.mxu0 0.0
        %1116 = vmatpush1.xpose.msra.mxu0 0.0
        %1117 = vmatprep.subr.mxu0 0.0
        %1118 = vmatpush1.xpose.msra.mxu0 0.0
        %1119 = vmatprep.subr.mxu0 0.0
        %1120 = vmatpush1.xpose.msra.mxu0 0.0
        %1121 = vmatprep.subr.mxu0 0.0
        %1122 = vmatpush1.xpose.msra.mxu0 0.0
        %1123 = vmatprep.subr.mxu0 0.0
        %1124 = vmatpush1.xpose.msra.mxu0 0.0
        %1125 = vmatprep.subr.mxu0 0.0
        %1126 = vmatpush1.xpose.msra.mxu0 0.0
        %1127 = vmatprep.subr.mxu0 0.0
        %1128 = vmatpush1.xpose.msra.mxu0 0.0
        %1129 = vmatprep.subr.mxu0 0.0
        %1130 = vmatpush1.xpose.msra.mxu0 0.0
        %1131 = vmatprep.subr.mxu0 0.0
        %1132 = vmatpush1.xpose.msra.mxu0 0.0
        %1133 = vmatprep.subr.mxu0 0.0
        %1134 = vmatpush1.xpose.msra.mxu0 0.0
        %1135 = vmatprep.subr.mxu0 0.0
        %1136 = vmatpush1.xpose.msra.mxu0 0.0
        %1137 = vmatprep.subr.mxu0 0.0
        %1138 = vmatpush1.xpose.msra.mxu0 0.0
        %1139 = vmatprep.subr.mxu0 0.0
        %1140 = vmatpush1.xpose.msra.mxu0 0.0
        %1141 = vmatprep.subr.mxu0 0.0
        %1142 = vmatpush1.xpose.msra.mxu0 0.0
        %1143 = vmatprep.mubr.f32.mxu0 0.0
        %1144 = vmatmul.mubr.f32.gmra.mrb[0].mxu0 %v925
        %v1145 = vpop.f32.mrb[0].mxu0
        %v1146 = vadd.f32 0.0, %v1145
        %v1147 = vpop.f32.mrb[0].mxu0
        %1148 = vmatprep.mubr.f32.mxu0 0.0
        %1149 = vmatmul.mubr.f32.gmra.mrb[0].mxu0 %v928
        %v1150 = vpop.f32.mrb[0].mxu0
        %v1151 = vadd.f32 0.0, %v1150
        %v1152 = vpop.f32.mrb[0].mxu0
        %1153 = vdwg.mxu0
        %v1154 = vadd.f32 %v843, %v1069
        %v1155 = vadd.f32 %v844, %v1071
        %v1156 = vadd.f32 %v845, %v1146
        %v1157 = vadd.f32 %v846, %v1075
        %v1158 = vadd.f32 %v847, %v1077
        %v1159 = vadd.f32 %v848, %v1151
        %s1160 = scalar_lea.vmem %s1, 48
        %v1161 = vld [vmem:[%s1160] sm:$0xff]
        %v1162 = vld [vmem:[%s1160 + $0x8] sm:$0xff]
        %v1165 = vrot.slane %v246, 2
        %v1166 = vsel %vm852, %v922, %v1165
        %v1167 = vrot.slane %v247, 2
        %v1168 = vsel %vm852, %v1165, %v1167
        %v1170 = vsel %vm265, %v1161, 0
        %v1173 = vsel %vm265, %v1162, 0
        %v1175 = vsel %vm265, %v1166, 0
        %v1177 = vsel %vm265, %v1168, 0
        %v1179 = vsel %vm265, %v1167, 0
        %1181 = vmatprep.subr.mxu0 0.0
        %1182 = vmatpush1.xpose.msra.mxu0 %v934
        %1183 = vmatprep.subr.mxu0 0.0
        %1184 = vmatpush1.xpose.msra.mxu0 %v936
        %1185 = vmatprep.subr.mxu0 0.0
        %1186 = vmatpush1.xpose.msra.mxu0 %v938
        %1187 = vmatprep.subr.mxu0 0.0
        %1188 = vmatpush1.xpose.msra.mxu0 %v940
        %1189 = vmatprep.subr.mxu0 0.0
        %1190 = vmatpush1.xpose.msra.mxu0 %v942
        %1191 = vmatprep.subr.mxu0 0.0
        %1192 = vmatpush1.xpose.msra.mxu0 %v944
        %1193 = vmatprep.subr.mxu0 0.0
        %1194 = vmatpush1.xpose.msra.mxu0 %v946
        %1195 = vmatprep.subr.mxu0 0.0
        %1196 = vmatpush1.xpose.msra.mxu0 %v948
        %1197 = vmatprep.subr.mxu0 0.0
        %1198 = vmatpush1.xpose.msra.mxu0 %v950
        %1199 = vmatprep.subr.mxu0 0.0
        %1200 = vmatpush1.xpose.msra.mxu0 %v952
        %1201 = vmatprep.subr.mxu0 0.0
        %1202 = vmatpush1.xpose.msra.mxu0 %v954
        %1203 = vmatprep.subr.mxu0 0.0
        %1204 = vmatpush1.xpose.msra.mxu0 %v956
        %1205 = vmatprep.subr.mxu0 0.0
        %1206 = vmatpush1.xpose.msra.mxu0 %v958
        %1207 = vmatprep.subr.mxu0 0.0
        %1208 = vmatpush1.xpose.msra.mxu0 %v960
        %1209 = vmatprep.subr.mxu0 0.0
        %1210 = vmatpush1.xpose.msra.mxu0 %v962
        %1211 = vmatprep.subr.mxu0 0.0
        %1212 = vmatpush1.xpose.msra.mxu0 %v964
        %1213 = vmatprep.subr.mxu0 0.0
        %1214 = vmatpush1.xpose.msra.mxu0 %v966
        %1215 = vmatprep.subr.mxu0 0.0
        %1216 = vmatpush1.xpose.msra.mxu0 %v968
        %1217 = vmatprep.subr.mxu0 0.0
        %1218 = vmatpush1.xpose.msra.mxu0 %v970
        %1219 = vmatprep.subr.mxu0 0.0
        %1220 = vmatpush1.xpose.msra.mxu0 %v972
        %1221 = vmatprep.subr.mxu0 0.0
        %1222 = vmatpush1.xpose.msra.mxu0 %v974
        %1223 = vmatprep.subr.mxu0 0.0
        %1224 = vmatpush1.xpose.msra.mxu0 %v976
        %1225 = vmatprep.subr.mxu0 0.0
        %1226 = vmatpush1.xpose.msra.mxu0 %v978
        %1227 = vmatprep.subr.mxu0 0.0
        %1228 = vmatpush1.xpose.msra.mxu0 %v980
        %1229 = vmatprep.subr.mxu0 0.0
        %1230 = vmatpush1.xpose.msra.mxu0 %v982
        %1231 = vmatprep.subr.mxu0 0.0
        %1232 = vmatpush1.xpose.msra.mxu0 %v984
        %1233 = vmatprep.subr.mxu0 0.0
        %1234 = vmatpush1.xpose.msra.mxu0 %v986
        %1235 = vmatprep.subr.mxu0 0.0
        %1236 = vmatpush1.xpose.msra.mxu0 %v988
        %1237 = vmatprep.subr.mxu0 0.0
        %1238 = vmatpush1.xpose.msra.mxu0 %v990
        %1239 = vmatprep.subr.mxu0 0.0
        %1240 = vmatpush1.xpose.msra.mxu0 %v992
        %1241 = vmatprep.subr.mxu0 0.0
        %1242 = vmatpush1.xpose.msra.mxu0 %v994
        %1243 = vmatprep.subr.mxu0 0.0
        %1244 = vmatpush1.xpose.msra.mxu0 %v996
        %1245 = vmatprep.mubr.f32.mxu0 0.0
        %1246 = vmatmul.mubr.f32.gmra.mrb[0].mxu0 %v1170
        %v1247 = vpop.f32.mrb[0].mxu0
        %v1248 = vadd.f32 0.0, %v1247
        %v1249 = vpop.f32.mrb[0].mxu0
        %v1250 = vadd.f32 0.0, %v1249
        %1251 = vmatprep.mubr.f32.mxu0 0.0
        %1252 = vmatmul.mubr.f32.gmra.mrb[0].mxu0 %v1173
        %v1253 = vpop.f32.mrb[0].mxu0
        %v1254 = vadd.f32 0.0, %v1253
        %v1255 = vpop.f32.mrb[0].mxu0
        %v1256 = vadd.f32 0.0, %v1255
        %1257 = vdwg.mxu0
        %1258 = vmatprep.subr.mxu0 0.0
        %1259 = vmatpush1.xpose.msra.mxu0 %v998
        %1260 = vmatprep.subr.mxu0 0.0
        %1261 = vmatpush1.xpose.msra.mxu0 %v1175
        %1262 = vmatprep.subr.mxu0 0.0
        %1263 = vmatpush1.xpose.msra.mxu0 %v1177
        %1264 = vmatprep.subr.mxu0 0.0
        %1265 = vmatpush1.xpose.msra.mxu0 %v1179
        %1266 = vmatprep.subr.mxu0 0.0
        %1267 = vmatpush1.xpose.msra.mxu0 0.0
        %1268 = vmatprep.subr.mxu0 0.0
        %1269 = vmatpush1.xpose.msra.mxu0 0.0
        %1270 = vmatprep.subr.mxu0 0.0
        %1271 = vmatpush1.xpose.msra.mxu0 0.0
        %1272 = vmatprep.subr.mxu0 0.0
        %1273 = vmatpush1.xpose.msra.mxu0 0.0
        %1274 = vmatprep.subr.mxu0 0.0
        %1275 = vmatpush1.xpose.msra.mxu0 0.0
        %1276 = vmatprep.subr.mxu0 0.0
        %1277 = vmatpush1.xpose.msra.mxu0 0.0
        %1278 = vmatprep.subr.mxu0 0.0
        %1279 = vmatpush1.xpose.msra.mxu0 0.0
        %1280 = vmatprep.subr.mxu0 0.0
        %1281 = vmatpush1.xpose.msra.mxu0 0.0
        %1282 = vmatprep.subr.mxu0 0.0
        %1283 = vmatpush1.xpose.msra.mxu0 0.0
        %1284 = vmatprep.subr.mxu0 0.0
        %1285 = vmatpush1.xpose.msra.mxu0 0.0
        %1286 = vmatprep.subr.mxu0 0.0
        %1287 = vmatpush1.xpose.msra.mxu0 0.0
        %1288 = vmatprep.subr.mxu0 0.0
        %1289 = vmatpush1.xpose.msra.mxu0 0.0
        %1290 = vmatprep.subr.mxu0 0.0
        %1291 = vmatpush1.xpose.msra.mxu0 0.0
        %1292 = vmatprep.subr.mxu0 0.0
        %1293 = vmatpush1.xpose.msra.mxu0 0.0
        %1294 = vmatprep.subr.mxu0 0.0
        %1295 = vmatpush1.xpose.msra.mxu0 0.0
        %1296 = vmatprep.subr.mxu0 0.0
        %1297 = vmatpush1.xpose.msra.mxu0 0.0
        %1298 = vmatprep.subr.mxu0 0.0
        %1299 = vmatpush1.xpose.msra.mxu0 0.0
        %1300 = vmatprep.subr.mxu0 0.0
        %1301 = vmatpush1.xpose.msra.mxu0 0.0
        %1302 = vmatprep.subr.mxu0 0.0
        %1303 = vmatpush1.xpose.msra.mxu0 0.0
        %1304 = vmatprep.subr.mxu0 0.0
        %1305 = vmatpush1.xpose.msra.mxu0 0.0
        %1306 = vmatprep.subr.mxu0 0.0
        %1307 = vmatpush1.xpose.msra.mxu0 0.0
        %1308 = vmatprep.subr.mxu0 0.0
        %1309 = vmatpush1.xpose.msra.mxu0 0.0
        %1310 = vmatprep.subr.mxu0 0.0
        %1311 = vmatpush1.xpose.msra.mxu0 0.0
        %1312 = vmatprep.subr.mxu0 0.0
        %1313 = vmatpush1.xpose.msra.mxu0 0.0
        %1314 = vmatprep.subr.mxu0 0.0
        %1315 = vmatpush1.xpose.msra.mxu0 0.0
        %1316 = vmatprep.subr.mxu0 0.0
        %1317 = vmatpush1.xpose.msra.mxu0 0.0
        %1318 = vmatprep.subr.mxu0 0.0
        %1319 = vmatpush1.xpose.msra.mxu0 0.0
        %1320 = vmatprep.subr.mxu0 0.0
        %1321 = vmatpush1.xpose.msra.mxu0 0.0
        %1322 = vmatprep.mubr.f32.mxu0 0.0
        %1323 = vmatmul.mubr.f32.gmra.mrb[0].mxu0 %v1170
        %v1324 = vpop.f32.mrb[0].mxu0
        %v1325 = vadd.f32 0.0, %v1324
        %v1326 = vpop.f32.mrb[0].mxu0
        %1327 = vmatprep.mubr.f32.mxu0 0.0
        %1328 = vmatmul.mubr.f32.gmra.mrb[0].mxu0 %v1173
        %v1329 = vpop.f32.mrb[0].mxu0
        %v1330 = vadd.f32 0.0, %v1329
        %v1331 = vpop.f32.mrb[0].mxu0
        %1332 = vdwg.mxu0
        %v1333 = vadd.f32 %v1154, %v1248
        %v1334 = vadd.f32 %v1155, %v1250
        %v1335 = vadd.f32 %v1156, %v1325
        %v1336 = vadd.f32 %v1157, %v1254
        %v1337 = vadd.f32 %v1158, %v1256
        %v1338 = vadd.f32 %v1159, %v1330
        %s1339 = scalar_lea.vmem %s1, 64
        %v1340 = vld [vmem:[%s1339] sm:$0xff]
        %v1341 = vld [vmem:[%s1339 + $0x8] sm:$0xff]
        %vm1343 = vcmask 1044480
        %v1344 = vrot.slane %v212, 3
        %v1345 = vrot.slane %v213, 3
        %v1346 = vsel %vm1343, %v1344, %v1345
        %v1347 = vrot.slane %v214, 3
        %v1348 = vsel %vm1343, %v1345, %v1347
        %v1349 = vrot.slane %v215, 3
        %v1350 = vsel %vm1343, %v1347, %v1349
        %v1351 = vrot.slane %v216, 3
        %v1352 = vsel %vm1343, %v1349, %v1351
        %v1353 = vrot.slane %v217, 3
        %v1354 = vsel %vm1343, %v1351, %v1353
        %v1355 = vrot.slane %v218, 3
        %v1356 = vsel %vm1343, %v1353, %v1355
        %v1357 = vrot.slane %v219, 3
        %v1358 = vsel %vm1343, %v1355, %v1357
        %v1359 = vrot.slane %v220, 3
        %v1360 = vsel %vm1343, %v1357, %v1359
        %v1361 = vrot.slane %v221, 3
        %v1362 = vsel %vm1343, %v1359, %v1361
        %v1363 = vrot.slane %v222, 3
        %v1364 = vsel %vm1343, %v1361, %v1363
        %v1365 = vrot.slane %v223, 3
        %v1366 = vsel %vm1343, %v1363, %v1365
        %v1367 = vrot.slane %v224, 3
        %v1368 = vsel %vm1343, %v1365, %v1367
        %v1369 = vrot.slane %v225, 3
        %v1370 = vsel %vm1343, %v1367, %v1369
        %v1371 = vrot.slane %v226, 3
        %v1372 = vsel %vm1343, %v1369, %v1371
        %v1373 = vrot.slane %v227, 3
        %v1374 = vsel %vm1343, %v1371, %v1373
        %v1375 = vrot.slane %v228, 3
        %v1376 = vsel %vm1343, %v1373, %v1375
        %v1377 = vrot.slane %v229, 3
        %v1378 = vsel %vm1343, %v1375, %v1377
        %v1379 = vrot.slane %v230, 3
        %v1380 = vsel %vm1343, %v1377, %v1379
        %v1381 = vrot.slane %v231, 3
        %v1382 = vsel %vm1343, %v1379, %v1381
        %v1383 = vrot.slane %v232, 3
        %v1384 = vsel %vm1343, %v1381, %v1383
        %v1385 = vrot.slane %v233, 3
        %v1386 = vsel %vm1343, %v1383, %v1385
        %v1387 = vrot.slane %v234, 3
        %v1388 = vsel %vm1343, %v1385, %v1387
        %v1389 = vrot.slane %v235, 3
        %v1390 = vsel %vm1343, %v1387, %v1389
        %v1391 = vrot.slane %v236, 3
        %v1392 = vsel %vm1343, %v1389, %v1391
        %v1393 = vrot.slane %v237, 3
        %v1394 = vsel %vm1343, %v1391, %v1393
        %v1395 = vrot.slane %v238, 3
        %v1396 = vsel %vm1343, %v1393, %v1395
        %v1397 = vrot.slane %v239, 3
        %v1398 = vsel %vm1343, %v1395, %v1397
        %v1399 = vrot.slane %v240, 3
        %v1400 = vsel %vm1343, %v1397, %v1399
        %v1401 = vrot.slane %v241, 3
        %v1402 = vsel %vm1343, %v1399, %v1401
        %v1403 = vrot.slane %v242, 3
        %v1404 = vsel %vm1343, %v1401, %v1403
        %v1405 = vrot.slane %v243, 3
        %v1406 = vsel %vm1343, %v1403, %v1405
        %v1407 = vrot.slane %v244, 3
        %v1408 = vsel %vm1343, %v1405, %v1407
        %v1409 = vrot.slane %v245, 3
        %v1410 = vsel %vm1343, %v1407, %v1409
        %v1411 = vrot.slane %v246, 3
        %v1412 = vsel %vm1343, %v1409, %v1411
        %v1413 = vrot.slane %v247, 3
        %v1414 = vsel %vm1343, %v1411, %v1413
        %v1415 = vrot.slane %v248, 3
        %v1416 = vsel %vm1343, %v1413, %v1415
        %v1418 = vsel %vm265, %v1340, 0
        %v1421 = vsel %vm265, %v1341, 0
        %v1423 = vsel %vm265, %v1346, 0
        %v1425 = vsel %vm265, %v1348, 0
        %v1427 = vsel %vm265, %v1350, 0
        %v1429 = vsel %vm265, %v1352, 0
        %v1431 = vsel %vm265, %v1354, 0
        %v1433 = vsel %vm265, %v1356, 0
        %v1435 = vsel %vm265, %v1358, 0
        %v1437 = vsel %vm265, %v1360, 0
        %v1439 = vsel %vm265, %v1362, 0
        %v1441 = vsel %vm265, %v1364, 0
        %v1443 = vsel %vm265, %v1366, 0
        %v1445 = vsel %vm265, %v1368, 0
        %v1447 = vsel %vm265, %v1370, 0
        %v1449 = vsel %vm265, %v1372, 0
        %v1451 = vsel %vm265, %v1374, 0
        %v1453 = vsel %vm265, %v1376, 0
        %v1455 = vsel %vm265, %v1378, 0
        %v1457 = vsel %vm265, %v1380, 0
        %v1459 = vsel %vm265, %v1382, 0
        %v1461 = vsel %vm265, %v1384, 0
        %v1463 = vsel %vm265, %v1386, 0
        %v1465 = vsel %vm265, %v1388, 0
        %v1467 = vsel %vm265, %v1390, 0
        %v1469 = vsel %vm265, %v1392, 0
        %v1471 = vsel %vm265, %v1394, 0
        %v1473 = vsel %vm265, %v1396, 0
        %v1475 = vsel %vm265, %v1398, 0
        %v1477 = vsel %vm265, %v1400, 0
        %v1479 = vsel %vm265, %v1402, 0
        %v1481 = vsel %vm265, %v1404, 0
        %v1483 = vsel %vm265, %v1406, 0
        %v1485 = vsel %vm265, %v1408, 0
        %v1487 = vsel %vm265, %v1410, 0
        %v1489 = vsel %vm265, %v1412, 0
        %v1491 = vsel %vm265, %v1414, 0
        %v1493 = vsel %vm265, %v1416, 0
        %1495 = vmatprep.subr.mxu0 0.0
        %1496 = vmatpush1.xpose.msra.mxu0 %v1423
        %1497 = vmatprep.subr.mxu0 0.0
        %1498 = vmatpush1.xpose.msra.mxu0 %v1425
        %1499 = vmatprep.subr.mxu0 0.0
        %1500 = vmatpush1.xpose.msra.mxu0 %v1427
        %1501 = vmatprep.subr.mxu0 0.0
        %1502 = vmatpush1.xpose.msra.mxu0 %v1429
        %1503 = vmatprep.subr.mxu0 0.0
        %1504 = vmatpush1.xpose.msra.mxu0 %v1431
        %1505 = vmatprep.subr.mxu0 0.0
        %1506 = vmatpush1.xpose.msra.mxu0 %v1433
        %1507 = vmatprep.subr.mxu0 0.0
        %1508 = vmatpush1.xpose.msra.mxu0 %v1435
        %1509 = vmatprep.subr.mxu0 0.0
        %1510 = vmatpush1.xpose.msra.mxu0 %v1437
        %1511 = vmatprep.subr.mxu0 0.0
        %1512 = vmatpush1.xpose.msra.mxu0 %v1439
        %1513 = vmatprep.subr.mxu0 0.0
        %1514 = vmatpush1.xpose.msra.mxu0 %v1441
        %1515 = vmatprep.subr.mxu0 0.0
        %1516 = vmatpush1.xpose.msra.mxu0 %v1443
        %1517 = vmatprep.subr.mxu0 0.0
        %1518 = vmatpush1.xpose.msra.mxu0 %v1445
        %1519 = vmatprep.subr.mxu0 0.0
        %1520 = vmatpush1.xpose.msra.mxu0 %v1447
        %1521 = vmatprep.subr.mxu0 0.0
        %1522 = vmatpush1.xpose.msra.mxu0 %v1449
        %1523 = vmatprep.subr.mxu0 0.0
        %1524 = vmatpush1.xpose.msra.mxu0 %v1451
        %1525 = vmatprep.subr.mxu0 0.0
        %1526 = vmatpush1.xpose.msra.mxu0 %v1453
        %1527 = vmatprep.subr.mxu0 0.0
        %1528 = vmatpush1.xpose.msra.mxu0 %v1455
        %1529 = vmatprep.subr.mxu0 0.0
        %1530 = vmatpush1.xpose.msra.mxu0 %v1457
        %1531 = vmatprep.subr.mxu0 0.0
        %1532 = vmatpush1.xpose.msra.mxu0 %v1459
        %1533 = vmatprep.subr.mxu0 0.0
        %1534 = vmatpush1.xpose.msra.mxu0 %v1461
        %1535 = vmatprep.subr.mxu0 0.0
        %1536 = vmatpush1.xpose.msra.mxu0 %v1463
        %1537 = vmatprep.subr.mxu0 0.0
        %1538 = vmatpush1.xpose.msra.mxu0 %v1465
        %1539 = vmatprep.subr.mxu0 0.0
        %1540 = vmatpush1.xpose.msra.mxu0 %v1467
        %1541 = vmatprep.subr.mxu0 0.0
        %1542 = vmatpush1.xpose.msra.mxu0 %v1469
        %1543 = vmatprep.subr.mxu0 0.0
        %1544 = vmatpush1.xpose.msra.mxu0 %v1471
        %1545 = vmatprep.subr.mxu0 0.0
        %1546 = vmatpush1.xpose.msra.mxu0 %v1473
        %1547 = vmatprep.subr.mxu0 0.0
        %1548 = vmatpush1.xpose.msra.mxu0 %v1475
        %1549 = vmatprep.subr.mxu0 0.0
        %1550 = vmatpush1.xpose.msra.mxu0 %v1477
        %1551 = vmatprep.subr.mxu0 0.0
        %1552 = vmatpush1.xpose.msra.mxu0 %v1479
        %1553 = vmatprep.subr.mxu0 0.0
        %1554 = vmatpush1.xpose.msra.mxu0 %v1481
        %1555 = vmatprep.subr.mxu0 0.0
        %1556 = vmatpush1.xpose.msra.mxu0 %v1483
        %1557 = vmatprep.subr.mxu0 0.0
        %1558 = vmatpush1.xpose.msra.mxu0 %v1485
        %1559 = vmatprep.mubr.f32.mxu0 0.0
        %1560 = vmatmul.mubr.f32.gmra.mrb[0].mxu0 %v1418
        %v1561 = vpop.f32.mrb[0].mxu0
        %v1562 = vadd.f32 0.0, %v1561
        %v1563 = vpop.f32.mrb[0].mxu0
        %v1564 = vadd.f32 0.0, %v1563
        %1565 = vmatprep.mubr.f32.mxu0 0.0
        %1566 = vmatmul.mubr.f32.gmra.mrb[0].mxu0 %v1421
        %v1567 = vpop.f32.mrb[0].mxu0
        %v1568 = vadd.f32 0.0, %v1567
        %v1569 = vpop.f32.mrb[0].mxu0
        %v1570 = vadd.f32 0.0, %v1569
        %1571 = vdwg.mxu0
        %1572 = vmatprep.subr.mxu0 0.0
        %1573 = vmatpush1.xpose.msra.mxu0 %v1487
        %1574 = vmatprep.subr.mxu0 0.0
        %1575 = vmatpush1.xpose.msra.mxu0 %v1489
        %1576 = vmatprep.subr.mxu0 0.0
        %1577 = vmatpush1.xpose.msra.mxu0 %v1491
        %1578 = vmatprep.subr.mxu0 0.0
        %1579 = vmatpush1.xpose.msra.mxu0 %v1493
        %1580 = vmatprep.subr.mxu0 0.0
        %1581 = vmatpush1.xpose.msra.mxu0 0.0
        %1582 = vmatprep.subr.mxu0 0.0
        %1583 = vmatpush1.xpose.msra.mxu0 0.0
        %1584 = vmatprep.subr.mxu0 0.0
        %1585 = vmatpush1.xpose.msra.mxu0 0.0
        %1586 = vmatprep.subr.mxu0 0.0
        %1587 = vmatpush1.xpose.msra.mxu0 0.0
        %1588 = vmatprep.subr.mxu0 0.0
        %1589 = vmatpush1.xpose.msra.mxu0 0.0
        %1590 = vmatprep.subr.mxu0 0.0
        %1591 = vmatpush1.xpose.msra.mxu0 0.0
        %1592 = vmatprep.subr.mxu0 0.0
        %1593 = vmatpush1.xpose.msra.mxu0 0.0
        %1594 = vmatprep.subr.mxu0 0.0
        %1595 = vmatpush1.xpose.msra.mxu0 0.0
        %1596 = vmatprep.subr.mxu0 0.0
        %1597 = vmatpush1.xpose.msra.mxu0 0.0
        %1598 = vmatprep.subr.mxu0 0.0
        %1599 = vmatpush1.xpose.msra.mxu0 0.0
        %1600 = vmatprep.subr.mxu0 0.0
        %1601 = vmatpush1.xpose.msra.mxu0 0.0
        %1602 = vmatprep.subr.mxu0 0.0
        %1603 = vmatpush1.xpose.msra.mxu0 0.0
        %1604 = vmatprep.subr.mxu0 0.0
        %1605 = vmatpush1.xpose.msra.mxu0 0.0
        %1606 = vmatprep.subr.mxu0 0.0
        %1607 = vmatpush1.xpose.msra.mxu0 0.0
        %1608 = vmatprep.subr.mxu0 0.0
        %1609 = vmatpush1.xpose.msra.mxu0 0.0
        %1610 = vmatprep.subr.mxu0 0.0
        %1611 = vmatpush1.xpose.msra.mxu0 0.0
        %1612 = vmatprep.subr.mxu0 0.0
        %1613 = vmatpush1.xpose.msra.mxu0 0.0
        %1614 = vmatprep.subr.mxu0 0.0
        %1615 = vmatpush1.xpose.msra.mxu0 0.0
        %1616 = vmatprep.subr.mxu0 0.0
        %1617 = vmatpush1.xpose.msra.mxu0 0.0
        %1618 = vmatprep.subr.mxu0 0.0
        %1619 = vmatpush1.xpose.msra.mxu0 0.0
        %1620 = vmatprep.subr.mxu0 0.0
        %1621 = vmatpush1.xpose.msra.mxu0 0.0
        %1622 = vmatprep.subr.mxu0 0.0
        %1623 = vmatpush1.xpose.msra.mxu0 0.0
        %1624 = vmatprep.subr.mxu0 0.0
        %1625 = vmatpush1.xpose.msra.mxu0 0.0
        %1626 = vmatprep.subr.mxu0 0.0
        %1627 = vmatpush1.xpose.msra.mxu0 0.0
        %1628 = vmatprep.subr.mxu0 0.0
        %1629 = vmatpush1.xpose.msra.mxu0 0.0
        %1630 = vmatprep.subr.mxu0 0.0
        %1631 = vmatpush1.xpose.msra.mxu0 0.0
        %1632 = vmatprep.subr.mxu0 0.0
        %1633 = vmatpush1.xpose.msra.mxu0 0.0
        %1634 = vmatprep.subr.mxu0 0.0
        %1635 = vmatpush1.xpose.msra.mxu0 0.0
        %1636 = vmatprep.mubr.f32.mxu0 0.0
        %1637 = vmatmul.mubr.f32.gmra.mrb[0].mxu0 %v1418
        %v1638 = vpop.f32.mrb[0].mxu0
        %v1639 = vadd.f32 0.0, %v1638
        %v1640 = vpop.f32.mrb[0].mxu0
        %1641 = vmatprep.mubr.f32.mxu0 0.0
        %1642 = vmatmul.mubr.f32.gmra.mrb[0].mxu0 %v1421
        %v1643 = vpop.f32.mrb[0].mxu0
        %v1644 = vadd.f32 0.0, %v1643
        %v1645 = vpop.f32.mrb[0].mxu0
        %1646 = vdwg.mxu0
        %v1647 = vadd.f32 %v1333, %v1562
        %v1648 = vadd.f32 %v1334, %v1564
        %v1649 = vadd.f32 %v1335, %v1639
        %v1650 = vadd.f32 %v1336, %v1568
        %v1651 = vadd.f32 %v1337, %v1570
        %v1652 = vadd.f32 %v1338, %v1644
        %s1653 = scalar_lea.vmem %s1, 80
        %v1654 = vld [vmem:[%s1653] sm:$0xff]
        %v1655 = vld [vmem:[%s1653 + $0x8] sm:$0xff]
        %vm1656 = vcmask 1043456
        %v1657 = vrot.slane %v212, 4
        %v1658 = vrot.slane %v213, 4
        %v1659 = vsel %vm1656, %v1657, %v1658
        %v1660 = vrot.slane %v214, 4
        %v1661 = vsel %vm1656, %v1658, %v1660
        %v1662 = vrot.slane %v215, 4
        %v1663 = vsel %vm1656, %v1660, %v1662
        %v1664 = vrot.slane %v216, 4
        %v1665 = vsel %vm1656, %v1662, %v1664
        %v1666 = vrot.slane %v217, 4
        %v1667 = vsel %vm1656, %v1664, %v1666
        %v1668 = vrot.slane %v218, 4
        %v1669 = vsel %vm1656, %v1666, %v1668
        %v1670 = vrot.slane %v219, 4
        %v1671 = vsel %vm1656, %v1668, %v1670
        %v1672 = vrot.slane %v220, 4
        %v1673 = vsel %vm1656, %v1670, %v1672
        %v1674 = vrot.slane %v221, 4
        %v1675 = vsel %vm1656, %v1672, %v1674
        %v1676 = vrot.slane %v222, 4
        %v1677 = vsel %vm1656, %v1674, %v1676
        %v1678 = vrot.slane %v223, 4
        %v1679 = vsel %vm1656, %v1676, %v1678
        %v1680 = vrot.slane %v224, 4
        %v1681 = vsel %vm1656, %v1678, %v1680
        %v1682 = vrot.slane %v225, 4
        %v1683 = vsel %vm1656, %v1680, %v1682
        %v1684 = vrot.slane %v226, 4
        %v1685 = vsel %vm1656, %v1682, %v1684
        %v1686 = vrot.slane %v227, 4
        %v1687 = vsel %vm1656, %v1684, %v1686
        %v1688 = vrot.slane %v228, 4
        %v1689 = vsel %vm1656, %v1686, %v1688
        %v1690 = vrot.slane %v229, 4
        %v1691 = vsel %vm1656, %v1688, %v1690
        %v1692 = vrot.slane %v230, 4
        %v1693 = vsel %vm1656, %v1690, %v1692
        %v1694 = vrot.slane %v231, 4
        %v1695 = vsel %vm1656, %v1692, %v1694
        %v1696 = vrot.slane %v232, 4
        %v1697 = vsel %vm1656, %v1694, %v1696
        %v1698 = vrot.slane %v233, 4
        %v1699 = vsel %vm1656, %v1696, %v1698
        %v1700 = vrot.slane %v234, 4
        %v1701 = vsel %vm1656, %v1698, %v1700
        %v1702 = vrot.slane %v235, 4
        %v1703 = vsel %vm1656, %v1700, %v1702
        %v1704 = vrot.slane %v236, 4
        %v1705 = vsel %vm1656, %v1702, %v1704
        %v1706 = vrot.slane %v237, 4
        %v1707 = vsel %vm1656, %v1704, %v1706
        %v1708 = vrot.slane %v238, 4
        %v1709 = vsel %vm1656, %v1706, %v1708
        %v1710 = vrot.slane %v239, 4
        %v1711 = vsel %vm1656, %v1708, %v1710
        %v1712 = vrot.slane %v240, 4
        %v1713 = vsel %vm1656, %v1710, %v1712
        %v1714 = vrot.slane %v241, 4
        %v1715 = vsel %vm1656, %v1712, %v1714
        %v1716 = vrot.slane %v242, 4
        %v1717 = vsel %vm1656, %v1714, %v1716
        %v1718 = vrot.slane %v243, 4
        %v1719 = vsel %vm1656, %v1716, %v1718
        %v1720 = vrot.slane %v244, 4
        %v1721 = vsel %vm1656, %v1718, %v1720
        %v1722 = vrot.slane %v245, 4
        %v1723 = vsel %vm1656, %v1720, %v1722
        %v1724 = vrot.slane %v246, 4
        %v1725 = vsel %vm1656, %v1722, %v1724
        %v1726 = vrot.slane %v247, 4
        %v1727 = vsel %vm1656, %v1724, %v1726
        %v1728 = vrot.slane %v248, 4
        %v1729 = vsel %vm1656, %v1726, %v1728
        %v1731 = vsel %vm265, %v1654, 0
        %v1734 = vsel %vm265, %v1655, 0
        %v1736 = vsel %vm265, %v1659, 0
        %v1738 = vsel %vm265, %v1661, 0
        %v1740 = vsel %vm265, %v1663, 0
        %v1742 = vsel %vm265, %v1665, 0
        %v1744 = vsel %vm265, %v1667, 0
        %v1746 = vsel %vm265, %v1669, 0
        %v1748 = vsel %vm265, %v1671, 0
        %v1750 = vsel %vm265, %v1673, 0
        %v1752 = vsel %vm265, %v1675, 0
        %v1754 = vsel %vm265, %v1677, 0
        %v1756 = vsel %vm265, %v1679, 0
        %v1758 = vsel %vm265, %v1681, 0
        %v1760 = vsel %vm265, %v1683, 0
        %v1762 = vsel %vm265, %v1685, 0
        %v1764 = vsel %vm265, %v1687, 0
        %v1766 = vsel %vm265, %v1689, 0
        %v1768 = vsel %vm265, %v1691, 0
        %v1770 = vsel %vm265, %v1693, 0
        %v1772 = vsel %vm265, %v1695, 0
        %v1774 = vsel %vm265, %v1697, 0
        %v1776 = vsel %vm265, %v1699, 0
        %v1778 = vsel %vm265, %v1701, 0
        %v1780 = vsel %vm265, %v1703, 0
        %v1782 = vsel %vm265, %v1705, 0
        %v1784 = vsel %vm265, %v1707, 0
        %v1786 = vsel %vm265, %v1709, 0
        %v1788 = vsel %vm265, %v1711, 0
        %v1790 = vsel %vm265, %v1713, 0
        %v1792 = vsel %vm265, %v1715, 0
        %v1794 = vsel %vm265, %v1717, 0
        %v1796 = vsel %vm265, %v1719, 0
        %v1798 = vsel %vm265, %v1721, 0
        %v1800 = vsel %vm265, %v1723, 0
        %v1802 = vsel %vm265, %v1725, 0
        %v1804 = vsel %vm265, %v1727, 0
        %v1806 = vsel %vm265, %v1729, 0
        %1808 = vmatprep.subr.mxu0 0.0
        %1809 = vmatpush1.xpose.msra.mxu0 %v1736
        %1810 = vmatprep.subr.mxu0 0.0
        %1811 = vmatpush1.xpose.msra.mxu0 %v1738
        %1812 = vmatprep.subr.mxu0 0.0
        %1813 = vmatpush1.xpose.msra.mxu0 %v1740
        %1814 = vmatprep.subr.mxu0 0.0
        %1815 = vmatpush1.xpose.msra.mxu0 %v1742
        %1816 = vmatprep.subr.mxu0 0.0
        %1817 = vmatpush1.xpose.msra.mxu0 %v1744
        %1818 = vmatprep.subr.mxu0 0.0
        %1819 = vmatpush1.xpose.msra.mxu0 %v1746
        %1820 = vmatprep.subr.mxu0 0.0
        %1821 = vmatpush1.xpose.msra.mxu0 %v1748
        %1822 = vmatprep.subr.mxu0 0.0
        %1823 = vmatpush1.xpose.msra.mxu0 %v1750
        %1824 = vmatprep.subr.mxu0 0.0
        %1825 = vmatpush1.xpose.msra.mxu0 %v1752
        %1826 = vmatprep.subr.mxu0 0.0
        %1827 = vmatpush1.xpose.msra.mxu0 %v1754
        %1828 = vmatprep.subr.mxu0 0.0
        %1829 = vmatpush1.xpose.msra.mxu0 %v1756
        %1830 = vmatprep.subr.mxu0 0.0
        %1831 = vmatpush1.xpose.msra.mxu0 %v1758
        %1832 = vmatprep.subr.mxu0 0.0
        %1833 = vmatpush1.xpose.msra.mxu0 %v1760
        %1834 = vmatprep.subr.mxu0 0.0
        %1835 = vmatpush1.xpose.msra.mxu0 %v1762
        %1836 = vmatprep.subr.mxu0 0.0
        %1837 = vmatpush1.xpose.msra.mxu0 %v1764
        %1838 = vmatprep.subr.mxu0 0.0
        %1839 = vmatpush1.xpose.msra.mxu0 %v1766
        %1840 = vmatprep.subr.mxu0 0.0
        %1841 = vmatpush1.xpose.msra.mxu0 %v1768
        %1842 = vmatprep.subr.mxu0 0.0
        %1843 = vmatpush1.xpose.msra.mxu0 %v1770
        %1844 = vmatprep.subr.mxu0 0.0
        %1845 = vmatpush1.xpose.msra.mxu0 %v1772
        %1846 = vmatprep.subr.mxu0 0.0
        %1847 = vmatpush1.xpose.msra.mxu0 %v1774
        %1848 = vmatprep.subr.mxu0 0.0
        %1849 = vmatpush1.xpose.msra.mxu0 %v1776
        %1850 = vmatprep.subr.mxu0 0.0
        %1851 = vmatpush1.xpose.msra.mxu0 %v1778
        %1852 = vmatprep.subr.mxu0 0.0
        %1853 = vmatpush1.xpose.msra.mxu0 %v1780
        %1854 = vmatprep.subr.mxu0 0.0
        %1855 = vmatpush1.xpose.msra.mxu0 %v1782
        %1856 = vmatprep.subr.mxu0 0.0
        %1857 = vmatpush1.xpose.msra.mxu0 %v1784
        %1858 = vmatprep.subr.mxu0 0.0
        %1859 = vmatpush1.xpose.msra.mxu0 %v1786
        %1860 = vmatprep.subr.mxu0 0.0
        %1861 = vmatpush1.xpose.msra.mxu0 %v1788
        %1862 = vmatprep.subr.mxu0 0.0
        %1863 = vmatpush1.xpose.msra.mxu0 %v1790
        %1864 = vmatprep.subr.mxu0 0.0
        %1865 = vmatpush1.xpose.msra.mxu0 %v1792
        %1866 = vmatprep.subr.mxu0 0.0
        %1867 = vmatpush1.xpose.msra.mxu0 %v1794
        %1868 = vmatprep.subr.mxu0 0.0
        %1869 = vmatpush1.xpose.msra.mxu0 %v1796
        %1870 = vmatprep.subr.mxu0 0.0
        %1871 = vmatpush1.xpose.msra.mxu0 %v1798
        %1872 = vmatprep.mubr.f32.mxu0 0.0
        %1873 = vmatmul.mubr.f32.gmra.mrb[0].mxu0 %v1731
        %v1874 = vpop.f32.mrb[0].mxu0
        %v1875 = vadd.f32 0.0, %v1874
        %v1876 = vpop.f32.mrb[0].mxu0
        %v1877 = vadd.f32 0.0, %v1876
        %1878 = vmatprep.mubr.f32.mxu0 0.0
        %1879 = vmatmul.mubr.f32.gmra.mrb[0].mxu0 %v1734
        %v1880 = vpop.f32.mrb[0].mxu0
        %v1881 = vadd.f32 0.0, %v1880
        %v1882 = vpop.f32.mrb[0].mxu0
        %v1883 = vadd.f32 0.0, %v1882
        %1884 = vdwg.mxu0
        %1885 = vmatprep.subr.mxu0 0.0
        %1886 = vmatpush1.xpose.msra.mxu0 %v1800
        %1887 = vmatprep.subr.mxu0 0.0
        %1888 = vmatpush1.xpose.msra.mxu0 %v1802
        %1889 = vmatprep.subr.mxu0 0.0
        %1890 = vmatpush1.xpose.msra.mxu0 %v1804
        %1891 = vmatprep.subr.mxu0 0.0
        %1892 = vmatpush1.xpose.msra.mxu0 %v1806
        %1893 = vmatprep.subr.mxu0 0.0
        %1894 = vmatpush1.xpose.msra.mxu0 0.0
        %1895 = vmatprep.subr.mxu0 0.0
        %1896 = vmatpush1.xpose.msra.mxu0 0.0
        %1897 = vmatprep.subr.mxu0 0.0
        %1898 = vmatpush1.xpose.msra.mxu0 0.0
        %1899 = vmatprep.subr.mxu0 0.0
        %1900 = vmatpush1.xpose.msra.mxu0 0.0
        %1901 = vmatprep.subr.mxu0 0.0
        %1902 = vmatpush1.xpose.msra.mxu0 0.0
        %1903 = vmatprep.subr.mxu0 0.0
        %1904 = vmatpush1.xpose.msra.mxu0 0.0
        %1905 = vmatprep.subr.mxu0 0.0
        %1906 = vmatpush1.xpose.msra.mxu0 0.0
        %1907 = vmatprep.subr.mxu0 0.0
        %1908 = vmatpush1.xpose.msra.mxu0 0.0
        %1909 = vmatprep.subr.mxu0 0.0
        %1910 = vmatpush1.xpose.msra.mxu0 0.0
        %1911 = vmatprep.subr.mxu0 0.0
        %1912 = vmatpush1.xpose.msra.mxu0 0.0
        %1913 = vmatprep.subr.mxu0 0.0
        %1914 = vmatpush1.xpose.msra.mxu0 0.0
        %1915 = vmatprep.subr.mxu0 0.0
        %1916 = vmatpush1.xpose.msra.mxu0 0.0
        %1917 = vmatprep.subr.mxu0 0.0
        %1918 = vmatpush1.xpose.msra.mxu0 0.0
        %1919 = vmatprep.subr.mxu0 0.0
        %1920 = vmatpush1.xpose.msra.mxu0 0.0
        %1921 = vmatprep.subr.mxu0 0.0
        %1922 = vmatpush1.xpose.msra.mxu0 0.0
        %1923 = vmatprep.subr.mxu0 0.0
        %1924 = vmatpush1.xpose.msra.mxu0 0.0
        %1925 = vmatprep.subr.mxu0 0.0
        %1926 = vmatpush1.xpose.msra.mxu0 0.0
        %1927 = vmatprep.subr.mxu0 0.0
        %1928 = vmatpush1.xpose.msra.mxu0 0.0
        %1929 = vmatprep.subr.mxu0 0.0
        %1930 = vmatpush1.xpose.msra.mxu0 0.0
        %1931 = vmatprep.subr.mxu0 0.0
        %1932 = vmatpush1.xpose.msra.mxu0 0.0
        %1933 = vmatprep.subr.mxu0 0.0
        %1934 = vmatpush1.xpose.msra.mxu0 0.0
        %1935 = vmatprep.subr.mxu0 0.0
        %1936 = vmatpush1.xpose.msra.mxu0 0.0
        %1937 = vmatprep.subr.mxu0 0.0
        %1938 = vmatpush1.xpose.msra.mxu0 0.0
        %1939 = vmatprep.subr.mxu0 0.0
        %1940 = vmatpush1.xpose.msra.mxu0 0.0
        %1941 = vmatprep.subr.mxu0 0.0
        %1942 = vmatpush1.xpose.msra.mxu0 0.0
        %1943 = vmatprep.subr.mxu0 0.0
        %1944 = vmatpush1.xpose.msra.mxu0 0.0
        %1945 = vmatprep.subr.mxu0 0.0
        %1946 = vmatpush1.xpose.msra.mxu0 0.0
        %1947 = vmatprep.subr.mxu0 0.0
        %1948 = vmatpush1.xpose.msra.mxu0 0.0
        %1949 = vmatprep.mubr.f32.mxu0 0.0
        %1950 = vmatmul.mubr.f32.gmra.mrb[0].mxu0 %v1731
        %v1951 = vpop.f32.mrb[0].mxu0
        %v1952 = vadd.f32 0.0, %v1951
        %v1953 = vpop.f32.mrb[0].mxu0
        %1954 = vmatprep.mubr.f32.mxu0 0.0
        %1955 = vmatmul.mubr.f32.gmra.mrb[0].mxu0 %v1734
        %v1956 = vpop.f32.mrb[0].mxu0
        %v1957 = vadd.f32 0.0, %v1956
        %v1958 = vpop.f32.mrb[0].mxu0
        %1959 = vdwg.mxu0
        %v1960 = vadd.f32 %v1647, %v1875
        %v1961 = vadd.f32 %v1648, %v1877
        %v1962 = vadd.f32 %v1649, %v1952
        %v1963 = vadd.f32 %v1650, %v1881
        %v1964 = vadd.f32 %v1651, %v1883
        %v1965 = vadd.f32 %v1652, %v1957
        %s1966 = scalar_lea.vmem %s1, 96
        %v1967 = vld [vmem:[%s1966] sm:$0xff]
        %v1968 = vld [vmem:[%s1966 + $0x8] sm:$0xff]
        %v1971 = vrot.slane %v249, 4
        %v1972 = vsel %vm1656, %v1728, %v1971
        %v1973 = vrot.slane %v250, 4
        %v1974 = vsel %vm1656, %v1971, %v1973
        %v1976 = vsel %vm265, %v1967, 0
        %v1979 = vsel %vm265, %v1968, 0
        %v1981 = vsel %vm265, %v1972, 0
        %v1983 = vsel %vm265, %v1974, 0
        %1985 = vmatprep.subr.mxu0 0.0
        %1986 = vmatpush1.xpose.msra.mxu0 %v1740
        %1987 = vmatprep.subr.mxu0 0.0
        %1988 = vmatpush1.xpose.msra.mxu0 %v1742
        %1989 = vmatprep.subr.mxu0 0.0
        %1990 = vmatpush1.xpose.msra.mxu0 %v1744
        %1991 = vmatprep.subr.mxu0 0.0
        %1992 = vmatpush1.xpose.msra.mxu0 %v1746
        %1993 = vmatprep.subr.mxu0 0.0
        %1994 = vmatpush1.xpose.msra.mxu0 %v1748
        %1995 = vmatprep.subr.mxu0 0.0
        %1996 = vmatpush1.xpose.msra.mxu0 %v1750
        %1997 = vmatprep.subr.mxu0 0.0
        %1998 = vmatpush1.xpose.msra.mxu0 %v1752
        %1999 = vmatprep.subr.mxu0 0.0
        %2000 = vmatpush1.xpose.msra.mxu0 %v1754
        %2001 = vmatprep.subr.mxu0 0.0
        %2002 = vmatpush1.xpose.msra.mxu0 %v1756
        %2003 = vmatprep.subr.mxu0 0.0
        %2004 = vmatpush1.xpose.msra.mxu0 %v1758
        %2005 = vmatprep.subr.mxu0 0.0
        %2006 = vmatpush1.xpose.msra.mxu0 %v1760
        %2007 = vmatprep.subr.mxu0 0.0
        %2008 = vmatpush1.xpose.msra.mxu0 %v1762
        %2009 = vmatprep.subr.mxu0 0.0
        %2010 = vmatpush1.xpose.msra.mxu0 %v1764
        %2011 = vmatprep.subr.mxu0 0.0
        %2012 = vmatpush1.xpose.msra.mxu0 %v1766
        %2013 = vmatprep.subr.mxu0 0.0
        %2014 = vmatpush1.xpose.msra.mxu0 %v1768
        %2015 = vmatprep.subr.mxu0 0.0
        %2016 = vmatpush1.xpose.msra.mxu0 %v1770
        %2017 = vmatprep.subr.mxu0 0.0
        %2018 = vmatpush1.xpose.msra.mxu0 %v1772
        %2019 = vmatprep.subr.mxu0 0.0
        %2020 = vmatpush1.xpose.msra.mxu0 %v1774
        %2021 = vmatprep.subr.mxu0 0.0
        %2022 = vmatpush1.xpose.msra.mxu0 %v1776
        %2023 = vmatprep.subr.mxu0 0.0
        %2024 = vmatpush1.xpose.msra.mxu0 %v1778
        %2025 = vmatprep.subr.mxu0 0.0
        %2026 = vmatpush1.xpose.msra.mxu0 %v1780
        %2027 = vmatprep.subr.mxu0 0.0
        %2028 = vmatpush1.xpose.msra.mxu0 %v1782
        %2029 = vmatprep.subr.mxu0 0.0
        %2030 = vmatpush1.xpose.msra.mxu0 %v1784
        %2031 = vmatprep.subr.mxu0 0.0
        %2032 = vmatpush1.xpose.msra.mxu0 %v1786
        %2033 = vmatprep.subr.mxu0 0.0
        %2034 = vmatpush1.xpose.msra.mxu0 %v1788
        %2035 = vmatprep.subr.mxu0 0.0
        %2036 = vmatpush1.xpose.msra.mxu0 %v1790
        %2037 = vmatprep.subr.mxu0 0.0
        %2038 = vmatpush1.xpose.msra.mxu0 %v1792
        %2039 = vmatprep.subr.mxu0 0.0
        %2040 = vmatpush1.xpose.msra.mxu0 %v1794
        %2041 = vmatprep.subr.mxu0 0.0
        %2042 = vmatpush1.xpose.msra.mxu0 %v1796
        %2043 = vmatprep.subr.mxu0 0.0
        %2044 = vmatpush1.xpose.msra.mxu0 %v1798
        %2045 = vmatprep.subr.mxu0 0.0
        %2046 = vmatpush1.xpose.msra.mxu0 %v1800
        %2047 = vmatprep.subr.mxu0 0.0
        %2048 = vmatpush1.xpose.msra.mxu0 %v1802
        %2049 = vmatprep.mubr.f32.mxu0 0.0
        %2050 = vmatmul.mubr.f32.gmra.mrb[0].mxu0 %v1976
        %v2051 = vpop.f32.mrb[0].mxu0
        %v2052 = vadd.f32 0.0, %v2051
        %v2053 = vpop.f32.mrb[0].mxu0
        %v2054 = vadd.f32 0.0, %v2053
        %2055 = vmatprep.mubr.f32.mxu0 0.0
        %2056 = vmatmul.mubr.f32.gmra.mrb[0].mxu0 %v1979
        %v2057 = vpop.f32.mrb[0].mxu0
        %v2058 = vadd.f32 0.0, %v2057
        %v2059 = vpop.f32.mrb[0].mxu0
        %v2060 = vadd.f32 0.0, %v2059
        %2061 = vdwg.mxu0
        %2062 = vmatprep.subr.mxu0 0.0
        %2063 = vmatpush1.xpose.msra.mxu0 %v1804
        %2064 = vmatprep.subr.mxu0 0.0
        %2065 = vmatpush1.xpose.msra.mxu0 %v1806
        %2066 = vmatprep.subr.mxu0 0.0
        %2067 = vmatpush1.xpose.msra.mxu0 %v1981
        %2068 = vmatprep.subr.mxu0 0.0
        %2069 = vmatpush1.xpose.msra.mxu0 %v1983
        %2070 = vmatprep.subr.mxu0 0.0
        %2071 = vmatpush1.xpose.msra.mxu0 0.0
        %2072 = vmatprep.subr.mxu0 0.0
        %2073 = vmatpush1.xpose.msra.mxu0 0.0
        %2074 = vmatprep.subr.mxu0 0.0
        %2075 = vmatpush1.xpose.msra.mxu0 0.0
        %2076 = vmatprep.subr.mxu0 0.0
        %2077 = vmatpush1.xpose.msra.mxu0 0.0
        %2078 = vmatprep.subr.mxu0 0.0
        %2079 = vmatpush1.xpose.msra.mxu0 0.0
        %2080 = vmatprep.subr.mxu0 0.0
        %2081 = vmatpush1.xpose.msra.mxu0 0.0
        %2082 = vmatprep.subr.mxu0 0.0
        %2083 = vmatpush1.xpose.msra.mxu0 0.0
        %2084 = vmatprep.subr.mxu0 0.0
        %2085 = vmatpush1.xpose.msra.mxu0 0.0
        %2086 = vmatprep.subr.mxu0 0.0
        %2087 = vmatpush1.xpose.msra.mxu0 0.0
        %2088 = vmatprep.subr.mxu0 0.0
        %2089 = vmatpush1.xpose.msra.mxu0 0.0
        %2090 = vmatprep.subr.mxu0 0.0
        %2091 = vmatpush1.xpose.msra.mxu0 0.0
        %2092 = vmatprep.subr.mxu0 0.0
        %2093 = vmatpush1.xpose.msra.mxu0 0.0
        %2094 = vmatprep.subr.mxu0 0.0
        %2095 = vmatpush1.xpose.msra.mxu0 0.0
        %2096 = vmatprep.subr.mxu0 0.0
        %2097 = vmatpush1.xpose.msra.mxu0 0.0
        %2098 = vmatprep.subr.mxu0 0.0
        %2099 = vmatpush1.xpose.msra.mxu0 0.0
        %2100 = vmatprep.subr.mxu0 0.0
        %2101 = vmatpush1.xpose.msra.mxu0 0.0
        %2102 = vmatprep.subr.mxu0 0.0
        %2103 = vmatpush1.xpose.msra.mxu0 0.0
        %2104 = vmatprep.subr.mxu0 0.0
        %2105 = vmatpush1.xpose.msra.mxu0 0.0
        %2106 = vmatprep.subr.mxu0 0.0
        %2107 = vmatpush1.xpose.msra.mxu0 0.0
        %2108 = vmatprep.subr.mxu0 0.0
        %2109 = vmatpush1.xpose.msra.mxu0 0.0
        %2110 = vmatprep.subr.mxu0 0.0
        %2111 = vmatpush1.xpose.msra.mxu0 0.0
        %2112 = vmatprep.subr.mxu0 0.0
        %2113 = vmatpush1.xpose.msra.mxu0 0.0
        %2114 = vmatprep.subr.mxu0 0.0
        %2115 = vmatpush1.xpose.msra.mxu0 0.0
        %2116 = vmatprep.subr.mxu0 0.0
        %2117 = vmatpush1.xpose.msra.mxu0 0.0
        %2118 = vmatprep.subr.mxu0 0.0
        %2119 = vmatpush1.xpose.msra.mxu0 0.0
        %2120 = vmatprep.subr.mxu0 0.0
        %2121 = vmatpush1.xpose.msra.mxu0 0.0
        %2122 = vmatprep.subr.mxu0 0.0
        %2123 = vmatpush1.xpose.msra.mxu0 0.0
        %2124 = vmatprep.subr.mxu0 0.0
        %2125 = vmatpush1.xpose.msra.mxu0 0.0
        %2126 = vmatprep.mubr.f32.mxu0 0.0
        %2127 = vmatmul.mubr.f32.gmra.mrb[0].mxu0 %v1976
        %v2128 = vpop.f32.mrb[0].mxu0
        %v2129 = vadd.f32 0.0, %v2128
        %v2130 = vpop.f32.mrb[0].mxu0
        %2131 = vmatprep.mubr.f32.mxu0 0.0
        %2132 = vmatmul.mubr.f32.gmra.mrb[0].mxu0 %v1979
        %v2133 = vpop.f32.mrb[0].mxu0
        %v2134 = vadd.f32 0.0, %v2133
        %v2135 = vpop.f32.mrb[0].mxu0
        %2136 = vdwg.mxu0
        %v2137 = vadd.f32 %v1960, %v2052
        %v2138 = vadd.f32 %v1961, %v2054
        %v2139 = vadd.f32 %v1962, %v2129
        %v2140 = vadd.f32 %v1963, %v2058
        %v2141 = vadd.f32 %v1964, %v2060
        %v2142 = vadd.f32 %v1965, %v2134
        %s2143 = scalar_lea.vmem %s1, 112
        %v2144 = vld [vmem:[%s2143] sm:$0xff]
        %v2145 = vld [vmem:[%s2143 + $0x8] sm:$0xff]
        %vm2146 = vcmask 1042432
        %v2147 = vrot.slane %v214, 5
        %v2148 = vrot.slane %v215, 5
        %v2149 = vsel %vm2146, %v2147, %v2148
        %v2150 = vrot.slane %v216, 5
        %v2151 = vsel %vm2146, %v2148, %v2150
        %v2152 = vrot.slane %v217, 5
        %v2153 = vsel %vm2146, %v2150, %v2152
        %v2154 = vrot.slane %v218, 5
        %v2155 = vsel %vm2146, %v2152, %v2154
        %v2156 = vrot.slane %v219, 5
        %v2157 = vsel %vm2146, %v2154, %v2156
        %v2158 = vrot.slane %v220, 5
        %v2159 = vsel %vm2146, %v2156, %v2158
        %v2160 = vrot.slane %v221, 5
        %v2161 = vsel %vm2146, %v2158, %v2160
        %v2162 = vrot.slane %v222, 5
        %v2163 = vsel %vm2146, %v2160, %v2162
        %v2164 = vrot.slane %v223, 5
        %v2165 = vsel %vm2146, %v2162, %v2164
        %v2166 = vrot.slane %v224, 5
        %v2167 = vsel %vm2146, %v2164, %v2166
        %v2168 = vrot.slane %v225, 5
        %v2169 = vsel %vm2146, %v2166, %v2168
        %v2170 = vrot.slane %v226, 5
        %v2171 = vsel %vm2146, %v2168, %v2170
        %v2172 = vrot.slane %v227, 5
        %v2173 = vsel %vm2146, %v2170, %v2172
        %v2174 = vrot.slane %v228, 5
        %v2175 = vsel %vm2146, %v2172, %v2174
        %v2176 = vrot.slane %v229, 5
        %v2177 = vsel %vm2146, %v2174, %v2176
        %v2178 = vrot.slane %v230, 5
        %v2179 = vsel %vm2146, %v2176, %v2178
        %v2180 = vrot.slane %v231, 5
        %v2181 = vsel %vm2146, %v2178, %v2180
        %v2182 = vrot.slane %v232, 5
        %v2183 = vsel %vm2146, %v2180, %v2182
        %v2184 = vrot.slane %v233, 5
        %v2185 = vsel %vm2146, %v2182, %v2184
        %v2186 = vrot.slane %v234, 5
        %v2187 = vsel %vm2146, %v2184, %v2186
        %v2188 = vrot.slane %v235, 5
        %v2189 = vsel %vm2146, %v2186, %v2188
        %v2190 = vrot.slane %v236, 5
        %v2191 = vsel %vm2146, %v2188, %v2190
        %v2192 = vrot.slane %v237, 5
        %v2193 = vsel %vm2146, %v2190, %v2192
        %v2194 = vrot.slane %v238, 5
        %v2195 = vsel %vm2146, %v2192, %v2194
        %v2196 = vrot.slane %v239, 5
        %v2197 = vsel %vm2146, %v2194, %v2196
        %v2198 = vrot.slane %v240, 5
        %v2199 = vsel %vm2146, %v2196, %v2198
        %v2200 = vrot.slane %v241, 5
        %v2201 = vsel %vm2146, %v2198, %v2200
        %v2202 = vrot.slane %v242, 5
        %v2203 = vsel %vm2146, %v2200, %v2202
        %v2204 = vrot.slane %v243, 5
        %v2205 = vsel %vm2146, %v2202, %v2204
        %v2206 = vrot.slane %v244, 5
        %v2207 = vsel %vm2146, %v2204, %v2206
        %v2208 = vrot.slane %v245, 5
        %v2209 = vsel %vm2146, %v2206, %v2208
        %v2210 = vrot.slane %v246, 5
        %v2211 = vsel %vm2146, %v2208, %v2210
        %v2212 = vrot.slane %v247, 5
        %v2213 = vsel %vm2146, %v2210, %v2212
        %v2214 = vrot.slane %v248, 5
        %v2215 = vsel %vm2146, %v2212, %v2214
        %v2216 = vrot.slane %v249, 5
        %v2217 = vsel %vm2146, %v2214, %v2216
        %v2218 = vrot.slane %v250, 5
        %v2219 = vsel %vm2146, %v2216, %v2218
        %v2221 = vsel %vm265, %v2144, 0
        %v2224 = vsel %vm265, %v2145, 0
        %v2226 = vsel %vm265, %v2149, 0
        %v2228 = vsel %vm265, %v2151, 0
        %v2230 = vsel %vm265, %v2153, 0
        %v2232 = vsel %vm265, %v2155, 0
        %v2234 = vsel %vm265, %v2157, 0
        %v2236 = vsel %vm265, %v2159, 0
        %v2238 = vsel %vm265, %v2161, 0
        %v2240 = vsel %vm265, %v2163, 0
        %v2242 = vsel %vm265, %v2165, 0
        %v2244 = vsel %vm265, %v2167, 0
        %v2246 = vsel %vm265, %v2169, 0
        %v2248 = vsel %vm265, %v2171, 0
        %v2250 = vsel %vm265, %v2173, 0
        %v2252 = vsel %vm265, %v2175, 0
        %v2254 = vsel %vm265, %v2177, 0
        %v2256 = vsel %vm265, %v2179, 0
        %v2258 = vsel %vm265, %v2181, 0
        %v2260 = vsel %vm265, %v2183, 0
        %v2262 = vsel %vm265, %v2185, 0
        %v2264 = vsel %vm265, %v2187, 0
        %v2266 = vsel %vm265, %v2189, 0
        %v2268 = vsel %vm265, %v2191, 0
        %v2270 = vsel %vm265, %v2193, 0
        %v2272 = vsel %vm265, %v2195, 0
        %v2274 = vsel %vm265, %v2197, 0
        %v2276 = vsel %vm265, %v2199, 0
        %v2278 = vsel %vm265, %v2201, 0
        %v2280 = vsel %vm265, %v2203, 0
        %v2282 = vsel %vm265, %v2205, 0
        %v2284 = vsel %vm265, %v2207, 0
        %v2286 = vsel %vm265, %v2209, 0
        %v2288 = vsel %vm265, %v2211, 0
        %v2290 = vsel %vm265, %v2213, 0
        %v2292 = vsel %vm265, %v2215, 0
        %v2294 = vsel %vm265, %v2217, 0
        %v2296 = vsel %vm265, %v2219, 0
        %2298 = vmatprep.subr.mxu0 0.0
        %2299 = vmatpush1.xpose.msra.mxu0 %v2226
        %2300 = vmatprep.subr.mxu0 0.0
        %2301 = vmatpush1.xpose.msra.mxu0 %v2228
        %2302 = vmatprep.subr.mxu0 0.0
        %2303 = vmatpush1.xpose.msra.mxu0 %v2230
        %2304 = vmatprep.subr.mxu0 0.0
        %2305 = vmatpush1.xpose.msra.mxu0 %v2232
        %2306 = vmatprep.subr.mxu0 0.0
        %2307 = vmatpush1.xpose.msra.mxu0 %v2234
        %2308 = vmatprep.subr.mxu0 0.0
        %2309 = vmatpush1.xpose.msra.mxu0 %v2236
        %2310 = vmatprep.subr.mxu0 0.0
        %2311 = vmatpush1.xpose.msra.mxu0 %v2238
        %2312 = vmatprep.subr.mxu0 0.0
        %2313 = vmatpush1.xpose.msra.mxu0 %v2240
        %2314 = vmatprep.subr.mxu0 0.0
        %2315 = vmatpush1.xpose.msra.mxu0 %v2242
        %2316 = vmatprep.subr.mxu0 0.0
        %2317 = vmatpush1.xpose.msra.mxu0 %v2244
        %2318 = vmatprep.subr.mxu0 0.0
        %2319 = vmatpush1.xpose.msra.mxu0 %v2246
        %2320 = vmatprep.subr.mxu0 0.0
        %2321 = vmatpush1.xpose.msra.mxu0 %v2248
        %2322 = vmatprep.subr.mxu0 0.0
        %2323 = vmatpush1.xpose.msra.mxu0 %v2250
        %2324 = vmatprep.subr.mxu0 0.0
        %2325 = vmatpush1.xpose.msra.mxu0 %v2252
        %2326 = vmatprep.subr.mxu0 0.0
        %2327 = vmatpush1.xpose.msra.mxu0 %v2254
        %2328 = vmatprep.subr.mxu0 0.0
        %2329 = vmatpush1.xpose.msra.mxu0 %v2256
        %2330 = vmatprep.subr.mxu0 0.0
        %2331 = vmatpush1.xpose.msra.mxu0 %v2258
        %2332 = vmatprep.subr.mxu0 0.0
        %2333 = vmatpush1.xpose.msra.mxu0 %v2260
        %2334 = vmatprep.subr.mxu0 0.0
        %2335 = vmatpush1.xpose.msra.mxu0 %v2262
        %2336 = vmatprep.subr.mxu0 0.0
        %2337 = vmatpush1.xpose.msra.mxu0 %v2264
        %2338 = vmatprep.subr.mxu0 0.0
        %2339 = vmatpush1.xpose.msra.mxu0 %v2266
        %2340 = vmatprep.subr.mxu0 0.0
        %2341 = vmatpush1.xpose.msra.mxu0 %v2268
        %2342 = vmatprep.subr.mxu0 0.0
        %2343 = vmatpush1.xpose.msra.mxu0 %v2270
        %2344 = vmatprep.subr.mxu0 0.0
        %2345 = vmatpush1.xpose.msra.mxu0 %v2272
        %2346 = vmatprep.subr.mxu0 0.0
        %2347 = vmatpush1.xpose.msra.mxu0 %v2274
        %2348 = vmatprep.subr.mxu0 0.0
        %2349 = vmatpush1.xpose.msra.mxu0 %v2276
        %2350 = vmatprep.subr.mxu0 0.0
        %2351 = vmatpush1.xpose.msra.mxu0 %v2278
        %2352 = vmatprep.subr.mxu0 0.0
        %2353 = vmatpush1.xpose.msra.mxu0 %v2280
        %2354 = vmatprep.subr.mxu0 0.0
        %2355 = vmatpush1.xpose.msra.mxu0 %v2282
        %2356 = vmatprep.subr.mxu0 0.0
        %2357 = vmatpush1.xpose.msra.mxu0 %v2284
        %2358 = vmatprep.subr.mxu0 0.0
        %2359 = vmatpush1.xpose.msra.mxu0 %v2286
        %2360 = vmatprep.subr.mxu0 0.0
        %2361 = vmatpush1.xpose.msra.mxu0 %v2288
        %2362 = vmatprep.mubr.f32.mxu0 0.0
        %2363 = vmatmul.mubr.f32.gmra.mrb[0].mxu0 %v2221
        %v2364 = vpop.f32.mrb[0].mxu0
        %v2365 = vadd.f32 0.0, %v2364
        %v2366 = vpop.f32.mrb[0].mxu0
        %v2367 = vadd.f32 0.0, %v2366
        %2368 = vmatprep.mubr.f32.mxu0 0.0
        %2369 = vmatmul.mubr.f32.gmra.mrb[0].mxu0 %v2224
        %v2370 = vpop.f32.mrb[0].mxu0
        %v2371 = vadd.f32 0.0, %v2370
        %v2372 = vpop.f32.mrb[0].mxu0
        %v2373 = vadd.f32 0.0, %v2372
        %2374 = vdwg.mxu0
        %2375 = vmatprep.subr.mxu0 0.0
        %2376 = vmatpush1.xpose.msra.mxu0 %v2290
        %2377 = vmatprep.subr.mxu0 0.0
        %2378 = vmatpush1.xpose.msra.mxu0 %v2292
        %2379 = vmatprep.subr.mxu0 0.0
        %2380 = vmatpush1.xpose.msra.mxu0 %v2294
        %2381 = vmatprep.subr.mxu0 0.0
        %2382 = vmatpush1.xpose.msra.mxu0 %v2296
        %2383 = vmatprep.subr.mxu0 0.0
        %2384 = vmatpush1.xpose.msra.mxu0 0.0
        %2385 = vmatprep.subr.mxu0 0.0
        %2386 = vmatpush1.xpose.msra.mxu0 0.0
        %2387 = vmatprep.subr.mxu0 0.0
        %2388 = vmatpush1.xpose.msra.mxu0 0.0
        %2389 = vmatprep.subr.mxu0 0.0
        %2390 = vmatpush1.xpose.msra.mxu0 0.0
        %2391 = vmatprep.subr.mxu0 0.0
        %2392 = vmatpush1.xpose.msra.mxu0 0.0
        %2393 = vmatprep.subr.mxu0 0.0
        %2394 = vmatpush1.xpose.msra.mxu0 0.0
        %2395 = vmatprep.subr.mxu0 0.0
        %2396 = vmatpush1.xpose.msra.mxu0 0.0
        %2397 = vmatprep.subr.mxu0 0.0
        %2398 = vmatpush1.xpose.msra.mxu0 0.0
        %2399 = vmatprep.subr.mxu0 0.0
        %2400 = vmatpush1.xpose.msra.mxu0 0.0
        %2401 = vmatprep.subr.mxu0 0.0
        %2402 = vmatpush1.xpose.msra.mxu0 0.0
        %2403 = vmatprep.subr.mxu0 0.0
        %2404 = vmatpush1.xpose.msra.mxu0 0.0
        %2405 = vmatprep.subr.mxu0 0.0
        %2406 = vmatpush1.xpose.msra.mxu0 0.0
        %2407 = vmatprep.subr.mxu0 0.0
        %2408 = vmatpush1.xpose.msra.mxu0 0.0
        %2409 = vmatprep.subr.mxu0 0.0
        %2410 = vmatpush1.xpose.msra.mxu0 0.0
        %2411 = vmatprep.subr.mxu0 0.0
        %2412 = vmatpush1.xpose.msra.mxu0 0.0
        %2413 = vmatprep.subr.mxu0 0.0
        %2414 = vmatpush1.xpose.msra.mxu0 0.0
        %2415 = vmatprep.subr.mxu0 0.0
        %2416 = vmatpush1.xpose.msra.mxu0 0.0
        %2417 = vmatprep.subr.mxu0 0.0
        %2418 = vmatpush1.xpose.msra.mxu0 0.0
        %2419 = vmatprep.subr.mxu0 0.0
        %2420 = vmatpush1.xpose.msra.mxu0 0.0
        %2421 = vmatprep.subr.mxu0 0.0
        %2422 = vmatpush1.xpose.msra.mxu0 0.0
        %2423 = vmatprep.subr.mxu0 0.0
        %2424 = vmatpush1.xpose.msra.mxu0 0.0
        %2425 = vmatprep.subr.mxu0 0.0
        %2426 = vmatpush1.xpose.msra.mxu0 0.0
        %2427 = vmatprep.subr.mxu0 0.0
        %2428 = vmatpush1.xpose.msra.mxu0 0.0
        %2429 = vmatprep.subr.mxu0 0.0
        %2430 = vmatpush1.xpose.msra.mxu0 0.0
        %2431 = vmatprep.subr.mxu0 0.0
        %2432 = vmatpush1.xpose.msra.mxu0 0.0
        %2433 = vmatprep.subr.mxu0 0.0
        %2434 = vmatpush1.xpose.msra.mxu0 0.0
        %2435 = vmatprep.subr.mxu0 0.0
        %2436 = vmatpush1.xpose.msra.mxu0 0.0
        %2437 = vmatprep.subr.mxu0 0.0
        %2438 = vmatpush1.xpose.msra.mxu0 0.0
        %2439 = vmatprep.mubr.f32.mxu0 0.0
        %2440 = vmatmul.mubr.f32.gmra.mrb[0].mxu0 %v2221
        %v2441 = vpop.f32.mrb[0].mxu0
        %v2442 = vadd.f32 0.0, %v2441
        %v2443 = vpop.f32.mrb[0].mxu0
        %2444 = vmatprep.mubr.f32.mxu0 0.0
        %2445 = vmatmul.mubr.f32.gmra.mrb[0].mxu0 %v2224
        %v2446 = vpop.f32.mrb[0].mxu0
        %v2447 = vadd.f32 0.0, %v2446
        %v2448 = vpop.f32.mrb[0].mxu0
        %2449 = vdwg.mxu0
        %v2450 = vadd.f32 %v2137, %v2365
        %v2451 = vadd.f32 %v2138, %v2367
        %v2452 = vadd.f32 %v2139, %v2442
        %v2453 = vadd.f32 %v2140, %v2371
        %v2454 = vadd.f32 %v2141, %v2373
        %v2455 = vadd.f32 %v2142, %v2447
        %s2456 = scalar_lea.vmem %s1, 128
        %v2457 = vld [vmem:[%s2456] sm:$0xff]
        %v2458 = vld [vmem:[%s2456 + $0x8] sm:$0xff]
        %vm2459 = vcmask 1041408
        %v2460 = vrot.slane %v214, 6
        %v2461 = vrot.slane %v215, 6
        %v2462 = vsel %vm2459, %v2460, %v2461
        %v2463 = vrot.slane %v216, 6
        %v2464 = vsel %vm2459, %v2461, %v2463
        %v2465 = vrot.slane %v217, 6
        %v2466 = vsel %vm2459, %v2463, %v2465
        %v2467 = vrot.slane %v218, 6
        %v2468 = vsel %vm2459, %v2465, %v2467
        %v2469 = vrot.slane %v219, 6
        %v2470 = vsel %vm2459, %v2467, %v2469
        %v2471 = vrot.slane %v220, 6
        %v2472 = vsel %vm2459, %v2469, %v2471
        %v2473 = vrot.slane %v221, 6
        %v2474 = vsel %vm2459, %v2471, %v2473
        %v2475 = vrot.slane %v222, 6
        %v2476 = vsel %vm2459, %v2473, %v2475
        %v2477 = vrot.slane %v223, 6
        %v2478 = vsel %vm2459, %v2475, %v2477
        %v2479 = vrot.slane %v224, 6
        %v2480 = vsel %vm2459, %v2477, %v2479
        %v2481 = vrot.slane %v225, 6
        %v2482 = vsel %vm2459, %v2479, %v2481
        %v2483 = vrot.slane %v226, 6
        %v2484 = vsel %vm2459, %v2481, %v2483
        %v2485 = vrot.slane %v227, 6
        %v2486 = vsel %vm2459, %v2483, %v2485
        %v2487 = vrot.slane %v228, 6
        %v2488 = vsel %vm2459, %v2485, %v2487
        %v2489 = vrot.slane %v229, 6
        %v2490 = vsel %vm2459, %v2487, %v2489
        %v2491 = vrot.slane %v230, 6
        %v2492 = vsel %vm2459, %v2489, %v2491
        %v2493 = vrot.slane %v231, 6
        %v2494 = vsel %vm2459, %v2491, %v2493
        %v2495 = vrot.slane %v232, 6
        %v2496 = vsel %vm2459, %v2493, %v2495
        %v2497 = vrot.slane %v233, 6
        %v2498 = vsel %vm2459, %v2495, %v2497
        %v2499 = vrot.slane %v234, 6
        %v2500 = vsel %vm2459, %v2497, %v2499
        %v2501 = vrot.slane %v235, 6
        %v2502 = vsel %vm2459, %v2499, %v2501
        %v2503 = vrot.slane %v236, 6
        %v2504 = vsel %vm2459, %v2501, %v2503
        %v2505 = vrot.slane %v237, 6
        %v2506 = vsel %vm2459, %v2503, %v2505
        %v2507 = vrot.slane %v238, 6
        %v2508 = vsel %vm2459, %v2505, %v2507
        %v2509 = vrot.slane %v239, 6
        %v2510 = vsel %vm2459, %v2507, %v2509
        %v2511 = vrot.slane %v240, 6
        %v2512 = vsel %vm2459, %v2509, %v2511
        %v2513 = vrot.slane %v241, 6
        %v2514 = vsel %vm2459, %v2511, %v2513
        %v2515 = vrot.slane %v242, 6
        %v2516 = vsel %vm2459, %v2513, %v2515
        %v2517 = vrot.slane %v243, 6
        %v2518 = vsel %vm2459, %v2515, %v2517
        %v2519 = vrot.slane %v244, 6
        %v2520 = vsel %vm2459, %v2517, %v2519
        %v2521 = vrot.slane %v245, 6
        %v2522 = vsel %vm2459, %v2519, %v2521
        %v2523 = vrot.slane %v246, 6
        %v2524 = vsel %vm2459, %v2521, %v2523
        %v2525 = vrot.slane %v247, 6
        %v2526 = vsel %vm2459, %v2523, %v2525
        %v2527 = vrot.slane %v248, 6
        %v2528 = vsel %vm2459, %v2525, %v2527
        %v2529 = vrot.slane %v249, 6
        %v2530 = vsel %vm2459, %v2527, %v2529
        %v2531 = vrot.slane %v250, 6
        %v2532 = vsel %vm2459, %v2529, %v2531
        %v2534 = vsel %vm265, %v2457, 0
        %v2537 = vsel %vm265, %v2458, 0
        %v2539 = vsel %vm265, %v2462, 0
        %v2541 = vsel %vm265, %v2464, 0
        %v2543 = vsel %vm265, %v2466, 0
        %v2545 = vsel %vm265, %v2468, 0
        %v2547 = vsel %vm265, %v2470, 0
        %v2549 = vsel %vm265, %v2472, 0
        %v2551 = vsel %vm265, %v2474, 0
        %v2553 = vsel %vm265, %v2476, 0
        %v2555 = vsel %vm265, %v2478, 0
        %v2557 = vsel %vm265, %v2480, 0
        %v2559 = vsel %vm265, %v2482, 0
        %v2561 = vsel %vm265, %v2484, 0
        %v2563 = vsel %vm265, %v2486, 0
        %v2565 = vsel %vm265, %v2488, 0
        %v2567 = vsel %vm265, %v2490, 0
        %v2569 = vsel %vm265, %v2492, 0
        %v2571 = vsel %vm265, %v2494, 0
        %v2573 = vsel %vm265, %v2496, 0
        %v2575 = vsel %vm265, %v2498, 0
        %v2577 = vsel %vm265, %v2500, 0
        %v2579 = vsel %vm265, %v2502, 0
        %v2581 = vsel %vm265, %v2504, 0
        %v2583 = vsel %vm265, %v2506, 0
        %v2585 = vsel %vm265, %v2508, 0
        %v2587 = vsel %vm265, %v2510, 0
        %v2589 = vsel %vm265, %v2512, 0
        %v2591 = vsel %vm265, %v2514, 0
        %v2593 = vsel %vm265, %v2516, 0
        %v2595 = vsel %vm265, %v2518, 0
        %v2597 = vsel %vm265, %v2520, 0
        %v2599 = vsel %vm265, %v2522, 0
        %v2601 = vsel %vm265, %v2524, 0
        %v2603 = vsel %vm265, %v2526, 0
        %v2605 = vsel %vm265, %v2528, 0
        %v2607 = vsel %vm265, %v2530, 0
        %v2609 = vsel %vm265, %v2532, 0
        %2611 = vmatprep.subr.mxu0 0.0
        %2612 = vmatpush1.xpose.msra.mxu0 %v2539
        %2613 = vmatprep.subr.mxu0 0.0
        %2614 = vmatpush1.xpose.msra.mxu0 %v2541
        %2615 = vmatprep.subr.mxu0 0.0
        %2616 = vmatpush1.xpose.msra.mxu0 %v2543
        %2617 = vmatprep.subr.mxu0 0.0
        %2618 = vmatpush1.xpose.msra.mxu0 %v2545
        %2619 = vmatprep.subr.mxu0 0.0
        %2620 = vmatpush1.xpose.msra.mxu0 %v2547
        %2621 = vmatprep.subr.mxu0 0.0
        %2622 = vmatpush1.xpose.msra.mxu0 %v2549
        %2623 = vmatprep.subr.mxu0 0.0
        %2624 = vmatpush1.xpose.msra.mxu0 %v2551
        %2625 = vmatprep.subr.mxu0 0.0
        %2626 = vmatpush1.xpose.msra.mxu0 %v2553
        %2627 = vmatprep.subr.mxu0 0.0
        %2628 = vmatpush1.xpose.msra.mxu0 %v2555
        %2629 = vmatprep.subr.mxu0 0.0
        %2630 = vmatpush1.xpose.msra.mxu0 %v2557
        %2631 = vmatprep.subr.mxu0 0.0
        %2632 = vmatpush1.xpose.msra.mxu0 %v2559
        %2633 = vmatprep.subr.mxu0 0.0
        %2634 = vmatpush1.xpose.msra.mxu0 %v2561
        %2635 = vmatprep.subr.mxu0 0.0
        %2636 = vmatpush1.xpose.msra.mxu0 %v2563
        %2637 = vmatprep.subr.mxu0 0.0
        %2638 = vmatpush1.xpose.msra.mxu0 %v2565
        %2639 = vmatprep.subr.mxu0 0.0
        %2640 = vmatpush1.xpose.msra.mxu0 %v2567
        %2641 = vmatprep.subr.mxu0 0.0
        %2642 = vmatpush1.xpose.msra.mxu0 %v2569
        %2643 = vmatprep.subr.mxu0 0.0
        %2644 = vmatpush1.xpose.msra.mxu0 %v2571
        %2645 = vmatprep.subr.mxu0 0.0
        %2646 = vmatpush1.xpose.msra.mxu0 %v2573
        %2647 = vmatprep.subr.mxu0 0.0
        %2648 = vmatpush1.xpose.msra.mxu0 %v2575
        %2649 = vmatprep.subr.mxu0 0.0
        %2650 = vmatpush1.xpose.msra.mxu0 %v2577
        %2651 = vmatprep.subr.mxu0 0.0
        %2652 = vmatpush1.xpose.msra.mxu0 %v2579
        %2653 = vmatprep.subr.mxu0 0.0
        %2654 = vmatpush1.xpose.msra.mxu0 %v2581
        %2655 = vmatprep.subr.mxu0 0.0
        %2656 = vmatpush1.xpose.msra.mxu0 %v2583
        %2657 = vmatprep.subr.mxu0 0.0
        %2658 = vmatpush1.xpose.msra.mxu0 %v2585
        %2659 = vmatprep.subr.mxu0 0.0
        %2660 = vmatpush1.xpose.msra.mxu0 %v2587
        %2661 = vmatprep.subr.mxu0 0.0
        %2662 = vmatpush1.xpose.msra.mxu0 %v2589
        %2663 = vmatprep.subr.mxu0 0.0
        %2664 = vmatpush1.xpose.msra.mxu0 %v2591
        %2665 = vmatprep.subr.mxu0 0.0
        %2666 = vmatpush1.xpose.msra.mxu0 %v2593
        %2667 = vmatprep.subr.mxu0 0.0
        %2668 = vmatpush1.xpose.msra.mxu0 %v2595
        %2669 = vmatprep.subr.mxu0 0.0
        %2670 = vmatpush1.xpose.msra.mxu0 %v2597
        %2671 = vmatprep.subr.mxu0 0.0
        %2672 = vmatpush1.xpose.msra.mxu0 %v2599
        %2673 = vmatprep.subr.mxu0 0.0
        %2674 = vmatpush1.xpose.msra.mxu0 %v2601
        %2675 = vmatprep.mubr.f32.mxu0 0.0
        %2676 = vmatmul.mubr.f32.gmra.mrb[0].mxu0 %v2534
        %v2677 = vpop.f32.mrb[0].mxu0
        %v2678 = vadd.f32 0.0, %v2677
        %v2679 = vpop.f32.mrb[0].mxu0
        %v2680 = vadd.f32 0.0, %v2679
        %2681 = vmatprep.mubr.f32.mxu0 0.0
        %2682 = vmatmul.mubr.f32.gmra.mrb[0].mxu0 %v2537
        %v2683 = vpop.f32.mrb[0].mxu0
        %v2684 = vadd.f32 0.0, %v2683
        %v2685 = vpop.f32.mrb[0].mxu0
        %v2686 = vadd.f32 0.0, %v2685
        %2687 = vdwg.mxu0
        %2688 = vmatprep.subr.mxu0 0.0
        %2689 = vmatpush1.xpose.msra.mxu0 %v2603
        %2690 = vmatprep.subr.mxu0 0.0
        %2691 = vmatpush1.xpose.msra.mxu0 %v2605
        %2692 = vmatprep.subr.mxu0 0.0
        %2693 = vmatpush1.xpose.msra.mxu0 %v2607
        %2694 = vmatprep.subr.mxu0 0.0
        %2695 = vmatpush1.xpose.msra.mxu0 %v2609
        %2696 = vmatprep.subr.mxu0 0.0
        %2697 = vmatpush1.xpose.msra.mxu0 0.0
        %2698 = vmatprep.subr.mxu0 0.0
        %2699 = vmatpush1.xpose.msra.mxu0 0.0
        %2700 = vmatprep.subr.mxu0 0.0
        %2701 = vmatpush1.xpose.msra.mxu0 0.0
        %2702 = vmatprep.subr.mxu0 0.0
        %2703 = vmatpush1.xpose.msra.mxu0 0.0
        %2704 = vmatprep.subr.mxu0 0.0
        %2705 = vmatpush1.xpose.msra.mxu0 0.0
        %2706 = vmatprep.subr.mxu0 0.0
        %2707 = vmatpush1.xpose.msra.mxu0 0.0
        %2708 = vmatprep.subr.mxu0 0.0
        %2709 = vmatpush1.xpose.msra.mxu0 0.0
        %2710 = vmatprep.subr.mxu0 0.0
        %2711 = vmatpush1.xpose.msra.mxu0 0.0
        %2712 = vmatprep.subr.mxu0 0.0
        %2713 = vmatpush1.xpose.msra.mxu0 0.0
        %2714 = vmatprep.subr.mxu0 0.0
        %2715 = vmatpush1.xpose.msra.mxu0 0.0
        %2716 = vmatprep.subr.mxu0 0.0
        %2717 = vmatpush1.xpose.msra.mxu0 0.0
        %2718 = vmatprep.subr.mxu0 0.0
        %2719 = vmatpush1.xpose.msra.mxu0 0.0
        %2720 = vmatprep.subr.mxu0 0.0
        %2721 = vmatpush1.xpose.msra.mxu0 0.0
        %2722 = vmatprep.subr.mxu0 0.0
        %2723 = vmatpush1.xpose.msra.mxu0 0.0
        %2724 = vmatprep.subr.mxu0 0.0
        %2725 = vmatpush1.xpose.msra.mxu0 0.0
        %2726 = vmatprep.subr.mxu0 0.0
        %2727 = vmatpush1.xpose.msra.mxu0 0.0
        %2728 = vmatprep.subr.mxu0 0.0
        %2729 = vmatpush1.xpose.msra.mxu0 0.0
        %2730 = vmatprep.subr.mxu0 0.0
        %2731 = vmatpush1.xpose.msra.mxu0 0.0
        %2732 = vmatprep.subr.mxu0 0.0
        %2733 = vmatpush1.xpose.msra.mxu0 0.0
        %2734 = vmatprep.subr.mxu0 0.0
        %2735 = vmatpush1.xpose.msra.mxu0 0.0
        %2736 = vmatprep.subr.mxu0 0.0
        %2737 = vmatpush1.xpose.msra.mxu0 0.0
        %2738 = vmatprep.subr.mxu0 0.0
        %2739 = vmatpush1.xpose.msra.mxu0 0.0
        %2740 = vmatprep.subr.mxu0 0.0
        %2741 = vmatpush1.xpose.msra.mxu0 0.0
        %2742 = vmatprep.subr.mxu0 0.0
        %2743 = vmatpush1.xpose.msra.mxu0 0.0
        %2744 = vmatprep.subr.mxu0 0.0
        %2745 = vmatpush1.xpose.msra.mxu0 0.0
        %2746 = vmatprep.subr.mxu0 0.0
        %2747 = vmatpush1.xpose.msra.mxu0 0.0
        %2748 = vmatprep.subr.mxu0 0.0
        %2749 = vmatpush1.xpose.msra.mxu0 0.0
        %2750 = vmatprep.subr.mxu0 0.0
        %2751 = vmatpush1.xpose.msra.mxu0 0.0
        %2752 = vmatprep.mubr.f32.mxu0 0.0
        %2753 = vmatmul.mubr.f32.gmra.mrb[0].mxu0 %v2534
        %v2754 = vpop.f32.mrb[0].mxu0
        %v2755 = vadd.f32 0.0, %v2754
        %v2756 = vpop.f32.mrb[0].mxu0
        %2757 = vmatprep.mubr.f32.mxu0 0.0
        %2758 = vmatmul.mubr.f32.gmra.mrb[0].mxu0 %v2537
        %v2759 = vpop.f32.mrb[0].mxu0
        %v2760 = vadd.f32 0.0, %v2759
        %v2761 = vpop.f32.mrb[0].mxu0
        %2762 = vdwg.mxu0
        %v2763 = vadd.f32 %v2450, %v2678
        %v2764 = vadd.f32 %v2451, %v2680
        %v2765 = vadd.f32 %v2452, %v2755
        %v2766 = vadd.f32 %v2453, %v2684
        %v2767 = vadd.f32 %v2454, %v2686
        %v2768 = vadd.f32 %v2455, %v2760
        %2769 = vst [vmem:[%s163] sm:$0xff] %v2763
        %2770 = vst [vmem:[%s163 + $0x8] sm:$0xff] %v2764
        %vm2771 = vcmask 244736
        %2772 = vst.msk [vmem:[%s163 + $0x10] sm:$0xff] %vm2771, %v2765
        %2773 = vst [vmem:[%s163 + $0x18] sm:$0xff] %v2766
        %2774 = vst [vmem:[%s163 + $0x20] sm:$0xff] %v2767
        %2775 = vst.msk [vmem:[%s163 + $0x28] sm:$0xff] %vm2771, %v2768
        %s2776 = sand.u32 %s93, 1
        %s2777 = scalar_lea.sflag [#allocation3], %s2776
        %s2778 = sand.u32 %s93, 1
        %s2779 = smul.addr %s2778, 48
        %s2780 = scalar_lea.vmem [#allocation2], %s2779
        // Predicated region
        $region33: #{tpu_custom_call.1} parent=31 // pred_check
          %p2781 = pneg %p103
        $region34: #{tpu_custom_call.1} parent=31 // pred_check_branch
          %2783 = sbr.rel (%p2781) target = $region36
        $region35: #{tpu_custom_call.1} parent=31 // pred_region
          %s2785 = ssub.s32 768, 768
          %2786 = vsyncadd %s2777, %s2785
          %s2787 = smul.addr %s17, 6
          %s2788 = smul.addr %s2787, 128
          %s2789 = scalar_lea.hbm %s3, %s2788
          %s2790 = sshll.u32 %s2780, 4
          %s2791 = int_to_ptr.vmem [resolvable:$true] %s2790
          %2796 = dma.vmem_to_hbm [thread:$0]  %s2791, 768, %s2789, %s2777, 384, 384, 24
        $region36: #{tpu_custom_call.1} parent=31 // pred_fallthru
          _
      $region32: #{tpu_custom_call.1} parent=5 // pred_fallthru
        _
      %p2797 = scmp.le.s32.totalorder 2, %s12
      // Predicated region
      $region37: #{tpu_custom_call.1} parent=5 // pred_check
        %p2798 = pneg %p2797
      $region38: #{tpu_custom_call.1} parent=5 // pred_check_branch
        %2800 = sbr.rel (%p2798) target = $region40
      $region39: #{tpu_custom_call.1} parent=5 // pred_region
        %s2801 = ssub.s32 %s12, 2
        // Predicated region
        $region41: #{tpu_custom_call.1} parent=39 // pred_check
          %p2802 = pneg %p109
        $region42: #{tpu_custom_call.1} parent=39 // pred_check_branch
          %2804 = sbr.rel (%p2802) target = $region44
        $region43: #{tpu_custom_call.1} parent=39 // pred_region
          %s2805 = sand.u32 %s94, 1
          %s2806 = scalar_lea.sflag [#allocation3], %s2805
          %s2807 = sand.u32 %s94, 1
          %s2808 = smul.addr %s2807, 48
          %s2809 = scalar_lea.vmem [#allocation2], %s2808
          %2810 = dma.done %s2806, 768
        $region44: #{tpu_custom_call.1} parent=39 // pred_fallthru
          _
      $region40: #{tpu_custom_call.1} parent=5 // pred_fallthru
        _
    $region6: #{tpu_custom_call.1} parent=1 // loop_footer
      %s16 = sadd.s32 1, %s12
    $region7: #{tpu_custom_call.1} parent=1 // loop_footer_branch
      %11 = sbr.rel target = $region3
    $region8: #{tpu_custom_call.1} parent=1 // loop_exit
      _
    %2811 = vsyncpa [#allocation3], 1
    %s2812 = scalar_lea.sflag [#allocation3], 1
    %2813 = vsyncpa %s2812, 1

</llo_original>
